<compile_context>
chip_gen: v5e
topology: v5e:2x2
jax: 0.10.0
libtpu: 0.0.40
codegen_flags: <defaults>
</compile_context>

<pallas_src>
import math
import jax
import jax.numpy as jnp
from jax.experimental import pallas as pl
from jax.experimental.pallas import tpu as pltpu

# ----- model hyper-parameters (small, consistent with the module) -----
NUM_LAYERS = 2
D_MODEL = 32
NUM_HEADS = 4
D_K = D_MODEL // NUM_HEADS
FF_HIDDEN = 64          # conv_hidden_dim
VOCAB = 50              # input_vocab_size
HIDDEN_SIZE = 16        # hidden_size of final dense
BATCH = 2
SEQ = 8
BS = BATCH * SEQ


# ----------------------------- kernel --------------------------------------
def _layer_norm(x, gamma, beta, eps):
    mean = jnp.mean(x, axis=-1, keepdims=True)
    var = jnp.mean(jnp.square(x - mean), axis=-1, keepdims=True)
    return (x - mean) * jax.lax.rsqrt(var + eps) * gamma + beta


def fused_forward_kernel(ids_ref, emb_tab_ref, eg_ref, eb_ref,
                         wqkv_ref, wh_ref, bh_ref,
                         g1_ref, be1_ref, w1_ref, bf1_ref,
                         w2_ref, bf2_ref, g2_ref, be2_ref,
                         wd_ref, bd_ref, out_ref):
    # ---- embedding gather (one-hot matmul) + embedding LayerNorm (eps=1e-12)
    ids = ids_ref[...]                                              # (BS, 1) int32
    vocab_iota = jax.lax.broadcasted_iota(jnp.int32, (BS, VOCAB), 1)
    onehot = (vocab_iota == ids).astype(jnp.float32)                # (BS, VOCAB)
    x = jnp.dot(onehot, emb_tab_ref[...],
                preferred_element_type=jnp.float32)                 # (BS, D)
    x = _layer_norm(x, eg_ref[...], eb_ref[...], 1e-12)

    # ---- block-diagonal mask: token i may attend to token j iff same batch.
    # SEQ is a power of two -> derive the batch block with a bit mask
    # (avoids vector integer division).
    row = jax.lax.broadcasted_iota(jnp.int32, (BS, BS), 0)
    col = jax.lax.broadcasted_iota(jnp.int32, (BS, BS), 1)
    blk = ~(SEQ - 1)
    same_batch = (row & blk) == (col & blk)                         # (BS, BS) bool

    scale = 1.0 / math.sqrt(D_K)
    neg_big = jnp.float32(-1e30)

    # ---- encoder layers (static unrolled; NUM_LAYERS = 2)
    for l in range(NUM_LAYERS):
        wqkv = wqkv_ref[l]                                          # (D, 3D)
        wh = wh_ref[l]                                              # (D, D)

        qkv = jnp.dot(x, wqkv, preferred_element_type=jnp.float32)  # (BS, 3D)
        q = qkv[:, :D_MODEL] * scale
        k = qkv[:, D_MODEL:2 * D_MODEL]
        v = qkv[:, 2 * D_MODEL:]

        # multi-head attention; accumulate W_h-projected head outputs
        # (no lane concatenation).
        attn = jnp.zeros((BS, D_MODEL), jnp.float32)
        for h in range(NUM_HEADS):                                  # static unrolled
            sl = slice(h * D_K, (h + 1) * D_K)
            scores = jax.lax.dot_general(
                q[:, sl], k[:, sl],
                dimension_numbers=(((1,), (1,)), ((), ())),
                preferred_element_type=jnp.float32)                 # (BS, BS)
            scores = jnp.where(same_batch, scores, neg_big)
            scores = scores - jnp.max(scores, axis=-1, keepdims=True)
            p = jnp.exp(scores)
            a = p * pl.reciprocal(jnp.sum(p, axis=-1, keepdims=True), approx=True)
            hh = jnp.dot(a, v[:, sl],
                         preferred_element_type=jnp.float32)        # (BS, d_k)
            attn = attn + jnp.dot(hh, wh[sl, :],
                                  preferred_element_type=jnp.float32)
        attn = attn + bh_ref[l]                                     # W_h bias

        out1 = _layer_norm(x + attn, g1_ref[l], be1_ref[l], 1e-6)

        ff = jnp.dot(out1, w1_ref[l],
                     preferred_element_type=jnp.float32) + bf1_ref[l]
        ff = jnp.maximum(ff, 0.0)                                   # ReLU
        ff = jnp.dot(ff, w2_ref[l],
                     preferred_element_type=jnp.float32) + bf2_ref[l]
        x = _layer_norm(out1 + ff, g2_ref[l], be2_ref[l], 1e-6)

    # ---- mean-pool over sequence, final dense
    pooled = jnp.sum(x.reshape(BATCH, SEQ, D_MODEL), axis=1) * (1.0 / SEQ)  # (B, D)
    out_ref[...] = jnp.dot(pooled, wd_ref[...],
                           preferred_element_type=jnp.float32) + bd_ref[...]


# ---------------------------- wrapper ---------------------------------------
def transformer_pooling_forward(input_ids, params):
    ids = input_ids.reshape(BS, 1).astype(jnp.int32)
    inputs = (
        ids,
        params["emb_table"], params["emb_ln_g"], params["emb_ln_b"],
        params["wqkv"], params["wh"], params["bh"],
        params["g1"], params["be1"], params["w1"], params["bf1"],
        params["w2"], params["bf2"], params["g2"], params["be2"],
        params["wd"], params["bd"],
    )
    vmem = pl.BlockSpec(memory_space=pltpu.MemorySpace.VMEM)
    return pl.pallas_call(
        fused_forward_kernel,
        out_shape=jax.ShapeDtypeStruct((BATCH, HIDDEN_SIZE), jnp.float32),
        in_specs=[vmem] * len(inputs),
        out_specs=pl.BlockSpec(memory_space=pltpu.MemorySpace.VMEM),
    )(*inputs)
    # TODO(synk): for production batch sizes, add a leading "parallel" batch
    # grid axis (or core_map) so v7x's second TensorCore is used.


# -------------------------- parameter setup ---------------------------------
def init_params(key):
    def normal(k, shape, scale=0.02):
        return scale * jax.random.normal(k, shape, dtype=jnp.float32)

    keys = iter(jax.random.split(key, 64))
    params = {}

    emb = normal(next(keys), (VOCAB, D_MODEL), scale=1.0)
    emb = emb.at[1].set(0.0)                        # padding_idx=1 row is zero
    params["emb_table"] = emb
    params["emb_ln_g"] = jnp.ones((1, D_MODEL), jnp.float32)
    params["emb_ln_b"] = jnp.zeros((1, D_MODEL), jnp.float32)

    stacks = {name: [] for name in
              ("wqkv", "wh", "bh", "g1", "be1", "w1", "bf1", "w2", "bf2", "g2", "be2")}
    for _ in range(NUM_LAYERS):
        wq = normal(next(keys), (D_MODEL, D_MODEL))
        wk = normal(next(keys), (D_MODEL, D_MODEL))
        wv = normal(next(keys), (D_MODEL, D_MODEL))
        stacks["wqkv"].append(jnp.concatenate([wq, wk, wv], axis=1))   # (D, 3D)
        stacks["wh"].append(normal(next(keys), (D_MODEL, D_MODEL)))
        stacks["bh"].append(normal(next(keys), (1, D_MODEL)))
        stacks["g1"].append(jnp.ones((1, D_MODEL), jnp.float32))
        stacks["be1"].append(jnp.zeros((1, D_MODEL), jnp.float32))
        stacks["w1"].append(normal(next(keys), (D_MODEL, FF_HIDDEN)))
        stacks["bf1"].append(normal(next(keys), (1, FF_HIDDEN)))
        stacks["w2"].append(normal(next(keys), (FF_HIDDEN, D_MODEL)))
        stacks["bf2"].append(normal(next(keys), (1, D_MODEL)))
        stacks["g2"].append(jnp.ones((1, D_MODEL), jnp.float32))
        stacks["be2"].append(jnp.zeros((1, D_MODEL), jnp.float32))

    for name, vals in stacks.items():
        params[name] = jnp.stack(vals)              # leading layer axis

    params["wd"] = normal(next(keys), (D_MODEL, HIDDEN_SIZE))
    params["bd"] = normal(next(keys), (1, HIDDEN_SIZE))
    return params


# --------------------------- run / check ------------------------------------
if __name__ == "__main__":
    key = jax.random.PRNGKey(0)
    k_ids, k_params = jax.random.split(key)
    input_ids = jax.random.randint(k_ids, (BATCH, SEQ), 0, VOCAB, dtype=jnp.int32)
    params = init_params(k_params)

    out = transformer_pooling_forward(input_ids, params)
    out = jax.block_until_ready(out)
    assert out.shape == (BATCH, HIDDEN_SIZE)
    assert bool(jnp.all(jnp.isfinite(out)))
    print("KERNEL_OK")
</pallas_src>

<mosaic_0001>
module attributes {stable_mosaic.version = 11 : i64} {
  func.func @fused_forward_kernel(%arg0: memref<16x1xi32, #tpu.memory_space<vmem>>, %arg1: memref<50x32xf32, #tpu.memory_space<vmem>>, %arg2: memref<1x32xf32, #tpu.memory_space<vmem>>, %arg3: memref<1x32xf32, #tpu.memory_space<vmem>>, %arg4: memref<2x32x96xf32, #tpu.memory_space<vmem>>, %arg5: memref<2x32x32xf32, #tpu.memory_space<vmem>>, %arg6: memref<2x1x32xf32, #tpu.memory_space<vmem>>, %arg7: memref<2x1x32xf32, #tpu.memory_space<vmem>>, %arg8: memref<2x1x32xf32, #tpu.memory_space<vmem>>, %arg9: memref<2x32x64xf32, #tpu.memory_space<vmem>>, %arg10: memref<2x1x64xf32, #tpu.memory_space<vmem>>, %arg11: memref<2x64x32xf32, #tpu.memory_space<vmem>>, %arg12: memref<2x1x32xf32, #tpu.memory_space<vmem>>, %arg13: memref<2x1x32xf32, #tpu.memory_space<vmem>>, %arg14: memref<2x1x32xf32, #tpu.memory_space<vmem>>, %arg15: memref<32x16xf32, #tpu.memory_space<vmem>>, %arg16: memref<1x16xf32, #tpu.memory_space<vmem>>, %arg17: memref<2x16xf32, #tpu.memory_space<vmem>>) attributes {dimension_semantics = [], scalar_prefetch = 0 : i64, scratch_operands = 0 : i64, tpu.core_type = #tpu.core_type<tc>} {
    %c0 = arith.constant 0 : index
    %c0_0 = arith.constant 0 : index
    %0 = vector.load %arg0[%c0, %c0_0] : memref<16x1xi32, #tpu.memory_space<vmem>>, vector<16x1xi32>
    %1 = tpu.iota {dimensions = array<i32: 1>} : vector<16x50xi32>
    %2 = vector.broadcast %0 : vector<16x1xi32> to vector<16x50xi32>
    %3 = arith.cmpi eq, %1, %2 : vector<16x50xi32>
    %4 = arith.extui %3 : vector<16x50xi1> to vector<16x50xi32>
    %5 = arith.sitofp %4 : vector<16x50xi32> to vector<16x50xf32>
    %c0_1 = arith.constant 0 : index
    %c0_2 = arith.constant 0 : index
    %6 = vector.load %arg1[%c0_1, %c0_2] : memref<50x32xf32, #tpu.memory_space<vmem>>, vector<50x32xf32>
    %cst = arith.constant dense<0.000000e+00> : vector<16x32xf32>
    %7 = tpu.matmul %5, %6, %cst {dimension_numbers = #tpu.dot_dimension_numbers<[1], [0], [0], [1], [0, 0, 1, 1], [], []>} : vector<16x50xf32>, vector<50x32xf32>, vector<16x32xf32> -> vector<16x32xf32>
    %c0_3 = arith.constant 0 : index
    %c0_4 = arith.constant 0 : index
    %8 = vector.load %arg2[%c0_3, %c0_4] : memref<1x32xf32, #tpu.memory_space<vmem>>, vector<1x32xf32>
    %c0_5 = arith.constant 0 : index
    %c0_6 = arith.constant 0 : index
    %9 = vector.load %arg3[%c0_5, %c0_6] : memref<1x32xf32, #tpu.memory_space<vmem>>, vector<1x32xf32>
    %cst_7 = arith.constant dense<0.000000e+00> : vector<16xf32>
    %10 = vector.multi_reduction <add>, %7, %cst_7 [1] : vector<16x32xf32> to vector<16xf32>
    %11 = vector.shape_cast %10 : vector<16xf32> to vector<16x1xf32>
    %cst_8 = arith.constant 3.200000e+01 : f32
    %12 = vector.broadcast %cst_8 : f32 to vector<16x1xf32>
    %13 = arith.divf %11, %12 : vector<16x1xf32>
    %14 = vector.broadcast %13 : vector<16x1xf32> to vector<16x32xf32>
    %15 = arith.subf %7, %14 : vector<16x32xf32>
    %16 = arith.mulf %15, %15 : vector<16x32xf32>
    %cst_9 = arith.constant dense<0.000000e+00> : vector<16xf32>
    %17 = vector.multi_reduction <add>, %16, %cst_9 [1] : vector<16x32xf32> to vector<16xf32>
    %18 = vector.shape_cast %17 : vector<16xf32> to vector<16x1xf32>
    %cst_10 = arith.constant 3.200000e+01 : f32
    %19 = vector.broadcast %cst_10 : f32 to vector<16x1xf32>
    %20 = arith.divf %18, %19 : vector<16x1xf32>
    %21 = vector.broadcast %13 : vector<16x1xf32> to vector<16x32xf32>
    %22 = arith.subf %7, %21 : vector<16x32xf32>
    %cst_11 = arith.constant 9.99999996E-13 : f32
    %23 = vector.broadcast %cst_11 : f32 to vector<16x1xf32>
    %24 = arith.addf %20, %23 : vector<16x1xf32>
    %25 = math.rsqrt %24 : vector<16x1xf32>
    %26 = vector.broadcast %25 : vector<16x1xf32> to vector<16x32xf32>
    %27 = arith.mulf %22, %26 : vector<16x32xf32>
    %28 = vector.broadcast %8 : vector<1x32xf32> to vector<16x32xf32>
    %29 = arith.mulf %27, %28 : vector<16x32xf32>
    %30 = vector.broadcast %9 : vector<1x32xf32> to vector<16x32xf32>
    %31 = arith.addf %29, %30 : vector<16x32xf32>
    %32 = tpu.iota {dimensions = array<i32: 0>} : vector<16x16xi32>
    %33 = tpu.iota {dimensions = array<i32: 1>} : vector<16x16xi32>
    %c-8_i32 = arith.constant -8 : i32
    %34 = vector.broadcast %c-8_i32 : i32 to vector<16x16xi32>
    %35 = arith.andi %32, %34 : vector<16x16xi32>
    %c-8_i32_12 = arith.constant -8 : i32
    %36 = vector.broadcast %c-8_i32_12 : i32 to vector<16x16xi32>
    %37 = arith.andi %33, %36 : vector<16x16xi32>
    %38 = arith.cmpi eq, %35, %37 : vector<16x16xi32>
    %c0_13 = arith.constant 0 : index
    %c0_14 = arith.constant 0 : index
    %c0_15 = arith.constant 0 : index
    %39 = vector.load %arg4[%c0_13, %c0_14, %c0_15] : memref<2x32x96xf32, #tpu.memory_space<vmem>>, vector<1x32x96xf32>
    %40 = vector.shape_cast %39 : vector<1x32x96xf32> to vector<32x96xf32>
    %c0_16 = arith.constant 0 : index
    %c0_17 = arith.constant 0 : index
    %c0_18 = arith.constant 0 : index
    %41 = vector.load %arg5[%c0_16, %c0_17, %c0_18] : memref<2x32x32xf32, #tpu.memory_space<vmem>>, vector<1x32x32xf32>
    %42 = vector.shape_cast %41 : vector<1x32x32xf32> to vector<32x32xf32>
    %cst_19 = arith.constant dense<0.000000e+00> : vector<16x96xf32>
    %43 = tpu.matmul %31, %40, %cst_19 {dimension_numbers = #tpu.dot_dimension_numbers<[1], [0], [0], [1], [0, 0, 1, 1], [], []>} : vector<16x32xf32>, vector<32x96xf32>, vector<16x96xf32> -> vector<16x96xf32>
    %44 = vector.extract_strided_slice %43 {offsets = [0, 0], sizes = [16, 32], strides = [1, 1]} : vector<16x96xf32> to vector<16x32xf32>
    %cst_20 = arith.constant 0.353553385 : f32
    %45 = vector.broadcast %cst_20 : f32 to vector<16x32xf32>
    %46 = arith.mulf %44, %45 : vector<16x32xf32>
    %47 = vector.extract_strided_slice %43 {offsets = [0, 32], sizes = [16, 32], strides = [1, 1]} : vector<16x96xf32> to vector<16x32xf32>
    %48 = vector.extract_strided_slice %43 {offsets = [0, 64], sizes = [16, 32], strides = [1, 1]} : vector<16x96xf32> to vector<16x32xf32>
    %cst_21 = arith.constant 0.000000e+00 : f32
    %49 = vector.broadcast %cst_21 : f32 to vector<16x32xf32>
    %50 = vector.extract_strided_slice %46 {offsets = [0, 0], sizes = [16, 8], strides = [1, 1]} : vector<16x32xf32> to vector<16x8xf32>
    %51 = vector.extract_strided_slice %47 {offsets = [0, 0], sizes = [16, 8], strides = [1, 1]} : vector<16x32xf32> to vector<16x8xf32>
    %cst_22 = arith.constant dense<0.000000e+00> : vector<16x16xf32>
    %52 = tpu.matmul %50, %51, %cst_22 {dimension_numbers = #tpu.dot_dimension_numbers<[1], [1], [0], [0], [0, 0, 1, 0], [], []>} : vector<16x8xf32>, vector<16x8xf32>, vector<16x16xf32> -> vector<16x16xf32>
    %cst_23 = arith.constant -1.000000e+30 : f32
    %53 = vector.broadcast %cst_23 : f32 to vector<16x16xf32>
    %54 = arith.select %38, %52, %53 : vector<16x16xi1>, vector<16x16xf32>
    %cst_24 = arith.constant dense<0xFF800000> : vector<16xf32>
    %55 = vector.multi_reduction <maximumf>, %54, %cst_24 [1] : vector<16x16xf32> to vector<16xf32>
    %56 = vector.shape_cast %55 : vector<16xf32> to vector<16x1xf32>
    %57 = vector.broadcast %56 : vector<16x1xf32> to vector<16x16xf32>
    %58 = arith.subf %54, %57 : vector<16x16xf32>
    %59 = math.exp %58 : vector<16x16xf32>
    %cst_25 = arith.constant dense<0.000000e+00> : vector<16xf32>
    %60 = vector.multi_reduction <add>, %59, %cst_25 [1] : vector<16x16xf32> to vector<16xf32>
    %61 = vector.shape_cast %60 : vector<16xf32> to vector<16x1xf32>
    %62 = tpu.reciprocal %61 {approx = true} : vector<16x1xf32> -> vector<16x1xf32>
    %63 = vector.broadcast %62 : vector<16x1xf32> to vector<16x16xf32>
    %64 = arith.mulf %59, %63 : vector<16x16xf32>
    %65 = vector.extract_strided_slice %48 {offsets = [0, 0], sizes = [16, 8], strides = [1, 1]} : vector<16x32xf32> to vector<16x8xf32>
    %cst_26 = arith.constant dense<0.000000e+00> : vector<16x8xf32>
    %66 = tpu.matmul %64, %65, %cst_26 {dimension_numbers = #tpu.dot_dimension_numbers<[1], [0], [0], [1], [0, 0, 1, 1], [], []>} : vector<16x16xf32>, vector<16x8xf32>, vector<16x8xf32> -> vector<16x8xf32>
    %67 = vector.extract_strided_slice %42 {offsets = [0, 0], sizes = [8, 32], strides = [1, 1]} : vector<32x32xf32> to vector<8x32xf32>
    %cst_27 = arith.constant dense<0.000000e+00> : vector<16x32xf32>
    %68 = tpu.matmul %66, %67, %cst_27 {dimension_numbers = #tpu.dot_dimension_numbers<[1], [0], [0], [1], [0, 0, 1, 1], [], []>} : vector<16x8xf32>, vector<8x32xf32>, vector<16x32xf32> -> vector<16x32xf32>
    %69 = arith.addf %49, %68 : vector<16x32xf32>
    %70 = vector.extract_strided_slice %46 {offsets = [0, 8], sizes = [16, 8], strides = [1, 1]} : vector<16x32xf32> to vector<16x8xf32>
    %71 = vector.extract_strided_slice %47 {offsets = [0, 8], sizes = [16, 8], strides = [1, 1]} : vector<16x32xf32> to vector<16x8xf32>
    %cst_28 = arith.constant dense<0.000000e+00> : vector<16x16xf32>
    %72 = tpu.matmul %70, %71, %cst_28 {dimension_numbers = #tpu.dot_dimension_numbers<[1], [1], [0], [0], [0, 0, 1, 0], [], []>} : vector<16x8xf32>, vector<16x8xf32>, vector<16x16xf32> -> vector<16x16xf32>
    %cst_29 = arith.constant -1.000000e+30 : f32
    %73 = vector.broadcast %cst_29 : f32 to vector<16x16xf32>
    %74 = arith.select %38, %72, %73 : vector<16x16xi1>, vector<16x16xf32>
    %cst_30 = arith.constant dense<0xFF800000> : vector<16xf32>
    %75 = vector.multi_reduction <maximumf>, %74, %cst_30 [1] : vector<16x16xf32> to vector<16xf32>
    %76 = vector.shape_cast %75 : vector<16xf32> to vector<16x1xf32>
    %77 = vector.broadcast %76 : vector<16x1xf32> to vector<16x16xf32>
    %78 = arith.subf %74, %77 : vector<16x16xf32>
    %79 = math.exp %78 : vector<16x16xf32>
    %cst_31 = arith.constant dense<0.000000e+00> : vector<16xf32>
    %80 = vector.multi_reduction <add>, %79, %cst_31 [1] : vector<16x16xf32> to vector<16xf32>
    %81 = vector.shape_cast %80 : vector<16xf32> to vector<16x1xf32>
    %82 = tpu.reciprocal %81 {approx = true} : vector<16x1xf32> -> vector<16x1xf32>
    %83 = vector.broadcast %82 : vector<16x1xf32> to vector<16x16xf32>
    %84 = arith.mulf %79, %83 : vector<16x16xf32>
    %85 = vector.extract_strided_slice %48 {offsets = [0, 8], sizes = [16, 8], strides = [1, 1]} : vector<16x32xf32> to vector<16x8xf32>
    %cst_32 = arith.constant dense<0.000000e+00> : vector<16x8xf32>
    %86 = tpu.matmul %84, %85, %cst_32 {dimension_numbers = #tpu.dot_dimension_numbers<[1], [0], [0], [1], [0, 0, 1, 1], [], []>} : vector<16x16xf32>, vector<16x8xf32>, vector<16x8xf32> -> vector<16x8xf32>
    %87 = vector.extract_strided_slice %42 {offsets = [8, 0], sizes = [8, 32], strides = [1, 1]} : vector<32x32xf32> to vector<8x32xf32>
    %cst_33 = arith.constant dense<0.000000e+00> : vector<16x32xf32>
    %88 = tpu.matmul %86, %87, %cst_33 {dimension_numbers = #tpu.dot_dimension_numbers<[1], [0], [0], [1], [0, 0, 1, 1], [], []>} : vector<16x8xf32>, vector<8x32xf32>, vector<16x32xf32> -> vector<16x32xf32>
    %89 = arith.addf %69, %88 : vector<16x32xf32>
    %90 = vector.extract_strided_slice %46 {offsets = [0, 16], sizes = [16, 8], strides = [1, 1]} : vector<16x32xf32> to vector<16x8xf32>
    %91 = vector.extract_strided_slice %47 {offsets = [0, 16], sizes = [16, 8], strides = [1, 1]} : vector<16x32xf32> to vector<16x8xf32>
    %cst_34 = arith.constant dense<0.000000e+00> : vector<16x16xf32>
    %92 = tpu.matmul %90, %91, %cst_34 {dimension_numbers = #tpu.dot_dimension_numbers<[1], [1], [0], [0], [0, 0, 1, 0], [], []>} : vector<16x8xf32>, vector<16x8xf32>, vector<16x16xf32> -> vector<16x16xf32>
    %cst_35 = arith.constant -1.000000e+30 : f32
    %93 = vector.broadcast %cst_35 : f32 to vector<16x16xf32>
    %94 = arith.select %38, %92, %93 : vector<16x16xi1>, vector<16x16xf32>
    %cst_36 = arith.constant dense<0xFF800000> : vector<16xf32>
    %95 = vector.multi_reduction <maximumf>, %94, %cst_36 [1] : vector<16x16xf32> to vector<16xf32>
    %96 = vector.shape_cast %95 : vector<16xf32> to vector<16x1xf32>
    %97 = vector.broadcast %96 : vector<16x1xf32> to vector<16x16xf32>
    %98 = arith.subf %94, %97 : vector<16x16xf32>
    %99 = math.exp %98 : vector<16x16xf32>
    %cst_37 = arith.constant dense<0.000000e+00> : vector<16xf32>
    %100 = vector.multi_reduction <add>, %99, %cst_37 [1] : vector<16x16xf32> to vector<16xf32>
    %101 = vector.shape_cast %100 : vector<16xf32> to vector<16x1xf32>
    %102 = tpu.reciprocal %101 {approx = true} : vector<16x1xf32> -> vector<16x1xf32>
    %103 = vector.broadcast %102 : vector<16x1xf32> to vector<16x16xf32>
    %104 = arith.mulf %99, %103 : vector<16x16xf32>
    %105 = vector.extract_strided_slice %48 {offsets = [0, 16], sizes = [16, 8], strides = [1, 1]} : vector<16x32xf32> to vector<16x8xf32>
    %cst_38 = arith.constant dense<0.000000e+00> : vector<16x8xf32>
    %106 = tpu.matmul %104, %105, %cst_38 {dimension_numbers = #tpu.dot_dimension_numbers<[1], [0], [0], [1], [0, 0, 1, 1], [], []>} : vector<16x16xf32>, vector<16x8xf32>, vector<16x8xf32> -> vector<16x8xf32>
    %107 = vector.extract_strided_slice %42 {offsets = [16, 0], sizes = [8, 32], strides = [1, 1]} : vector<32x32xf32> to vector<8x32xf32>
    %cst_39 = arith.constant dense<0.000000e+00> : vector<16x32xf32>
    %108 = tpu.matmul %106, %107, %cst_39 {dimension_numbers = #tpu.dot_dimension_numbers<[1], [0], [0], [1], [0, 0, 1, 1], [], []>} : vector<16x8xf32>, vector<8x32xf32>, vector<16x32xf32> -> vector<16x32xf32>
    %109 = arith.addf %89, %108 : vector<16x32xf32>
    %110 = vector.extract_strided_slice %46 {offsets = [0, 24], sizes = [16, 8], strides = [1, 1]} : vector<16x32xf32> to vector<16x8xf32>
    %111 = vector.extract_strided_slice %47 {offsets = [0, 24], sizes = [16, 8], strides = [1, 1]} : vector<16x32xf32> to vector<16x8xf32>
    %cst_40 = arith.constant dense<0.000000e+00> : vector<16x16xf32>
    %112 = tpu.matmul %110, %111, %cst_40 {dimension_numbers = #tpu.dot_dimension_numbers<[1], [1], [0], [0], [0, 0, 1, 0], [], []>} : vector<16x8xf32>, vector<16x8xf32>, vector<16x16xf32> -> vector<16x16xf32>
    %cst_41 = arith.constant -1.000000e+30 : f32
    %113 = vector.broadcast %cst_41 : f32 to vector<16x16xf32>
    %114 = arith.select %38, %112, %113 : vector<16x16xi1>, vector<16x16xf32>
    %cst_42 = arith.constant dense<0xFF800000> : vector<16xf32>
    %115 = vector.multi_reduction <maximumf>, %114, %cst_42 [1] : vector<16x16xf32> to vector<16xf32>
    %116 = vector.shape_cast %115 : vector<16xf32> to vector<16x1xf32>
    %117 = vector.broadcast %116 : vector<16x1xf32> to vector<16x16xf32>
    %118 = arith.subf %114, %117 : vector<16x16xf32>
    %119 = math.exp %118 : vector<16x16xf32>
    %cst_43 = arith.constant dense<0.000000e+00> : vector<16xf32>
    %120 = vector.multi_reduction <add>, %119, %cst_43 [1] : vector<16x16xf32> to vector<16xf32>
    %121 = vector.shape_cast %120 : vector<16xf32> to vector<16x1xf32>
    %122 = tpu.reciprocal %121 {approx = true} : vector<16x1xf32> -> vector<16x1xf32>
    %123 = vector.broadcast %122 : vector<16x1xf32> to vector<16x16xf32>
    %124 = arith.mulf %119, %123 : vector<16x16xf32>
    %125 = vector.extract_strided_slice %48 {offsets = [0, 24], sizes = [16, 8], strides = [1, 1]} : vector<16x32xf32> to vector<16x8xf32>
    %cst_44 = arith.constant dense<0.000000e+00> : vector<16x8xf32>
    %126 = tpu.matmul %124, %125, %cst_44 {dimension_numbers = #tpu.dot_dimension_numbers<[1], [0], [0], [1], [0, 0, 1, 1], [], []>} : vector<16x16xf32>, vector<16x8xf32>, vector<16x8xf32> -> vector<16x8xf32>
    %127 = vector.extract_strided_slice %42 {offsets = [24, 0], sizes = [8, 32], strides = [1, 1]} : vector<32x32xf32> to vector<8x32xf32>
    %cst_45 = arith.constant dense<0.000000e+00> : vector<16x32xf32>
    %128 = tpu.matmul %126, %127, %cst_45 {dimension_numbers = #tpu.dot_dimension_numbers<[1], [0], [0], [1], [0, 0, 1, 1], [], []>} : vector<16x8xf32>, vector<8x32xf32>, vector<16x32xf32> -> vector<16x32xf32>
    %129 = arith.addf %109, %128 : vector<16x32xf32>
    %c0_46 = arith.constant 0 : index
    %c0_47 = arith.constant 0 : index
    %c0_48 = arith.constant 0 : index
    %130 = vector.load %arg6[%c0_46, %c0_47, %c0_48] : memref<2x1x32xf32, #tpu.memory_space<vmem>>, vector<1x1x32xf32>
    %131 = vector.shape_cast %130 : vector<1x1x32xf32> to vector<1x32xf32>
    %132 = vector.broadcast %131 : vector<1x32xf32> to vector<16x32xf32>
    %133 = arith.addf %129, %132 : vector<16x32xf32>
    %134 = arith.addf %31, %133 : vector<16x32xf32>
    %c0_49 = arith.constant 0 : index
    %c0_50 = arith.constant 0 : index
    %c0_51 = arith.constant 0 : index
    %135 = vector.load %arg7[%c0_49, %c0_50, %c0_51] : memref<2x1x32xf32, #tpu.memory_space<vmem>>, vector<1x1x32xf32>
    %136 = vector.shape_cast %135 : vector<1x1x32xf32> to vector<1x32xf32>
    %c0_52 = arith.constant 0 : index
    %c0_53 = arith.constant 0 : index
    %c0_54 = arith.constant 0 : index
    %137 = vector.load %arg8[%c0_52, %c0_53, %c0_54] : memref<2x1x32xf32, #tpu.memory_space<vmem>>, vector<1x1x32xf32>
    %138 = vector.shape_cast %137 : vector<1x1x32xf32> to vector<1x32xf32>
    %cst_55 = arith.constant dense<0.000000e+00> : vector<16xf32>
    %139 = vector.multi_reduction <add>, %134, %cst_55 [1] : vector<16x32xf32> to vector<16xf32>
    %140 = vector.shape_cast %139 : vector<16xf32> to vector<16x1xf32>
    %cst_56 = arith.constant 3.200000e+01 : f32
    %141 = vector.broadcast %cst_56 : f32 to vector<16x1xf32>
    %142 = arith.divf %140, %141 : vector<16x1xf32>
    %143 = vector.broadcast %142 : vector<16x1xf32> to vector<16x32xf32>
    %144 = arith.subf %134, %143 : vector<16x32xf32>
    %145 = arith.mulf %144, %144 : vector<16x32xf32>
    %cst_57 = arith.constant dense<0.000000e+00> : vector<16xf32>
    %146 = vector.multi_reduction <add>, %145, %cst_57 [1] : vector<16x32xf32> to vector<16xf32>
    %147 = vector.shape_cast %146 : vector<16xf32> to vector<16x1xf32>
    %cst_58 = arith.constant 3.200000e+01 : f32
    %148 = vector.broadcast %cst_58 : f32 to vector<16x1xf32>
    %149 = arith.divf %147, %148 : vector<16x1xf32>
    %150 = vector.broadcast %142 : vector<16x1xf32> to vector<16x32xf32>
    %151 = arith.subf %134, %150 : vector<16x32xf32>
    %cst_59 = arith.constant 9.99999997E-7 : f32
    %152 = vector.broadcast %cst_59 : f32 to vector<16x1xf32>
    %153 = arith.addf %149, %152 : vector<16x1xf32>
    %154 = math.rsqrt %153 : vector<16x1xf32>
    %155 = vector.broadcast %154 : vector<16x1xf32> to vector<16x32xf32>
    %156 = arith.mulf %151, %155 : vector<16x32xf32>
    %157 = vector.broadcast %136 : vector<1x32xf32> to vector<16x32xf32>
    %158 = arith.mulf %156, %157 : vector<16x32xf32>
    %159 = vector.broadcast %138 : vector<1x32xf32> to vector<16x32xf32>
    %160 = arith.addf %158, %159 : vector<16x32xf32>
    %c0_60 = arith.constant 0 : index
    %c0_61 = arith.constant 0 : index
    %c0_62 = arith.constant 0 : index
    %161 = vector.load %arg9[%c0_60, %c0_61, %c0_62] : memref<2x32x64xf32, #tpu.memory_space<vmem>>, vector<1x32x64xf32>
    %162 = vector.shape_cast %161 : vector<1x32x64xf32> to vector<32x64xf32>
    %cst_63 = arith.constant dense<0.000000e+00> : vector<16x64xf32>
    %163 = tpu.matmul %160, %162, %cst_63 {dimension_numbers = #tpu.dot_dimension_numbers<[1], [0], [0], [1], [0, 0, 1, 1], [], []>} : vector<16x32xf32>, vector<32x64xf32>, vector<16x64xf32> -> vector<16x64xf32>
    %c0_64 = arith.constant 0 : index
    %c0_65 = arith.constant 0 : index
    %c0_66 = arith.constant 0 : index
    %164 = vector.load %arg10[%c0_64, %c0_65, %c0_66] : memref<2x1x64xf32, #tpu.memory_space<vmem>>, vector<1x1x64xf32>
    %165 = vector.shape_cast %164 : vector<1x1x64xf32> to vector<1x64xf32>
    %166 = vector.broadcast %165 : vector<1x64xf32> to vector<16x64xf32>
    %167 = arith.addf %163, %166 : vector<16x64xf32>
    %cst_67 = arith.constant 0.000000e+00 : f32
    %168 = vector.broadcast %cst_67 : f32 to vector<16x64xf32>
    %169 = arith.maximumf %167, %168 : vector<16x64xf32>
    %c0_68 = arith.constant 0 : index
    %c0_69 = arith.constant 0 : index
    %c0_70 = arith.constant 0 : index
    %170 = vector.load %arg11[%c0_68, %c0_69, %c0_70] : memref<2x64x32xf32, #tpu.memory_space<vmem>>, vector<1x64x32xf32>
    %171 = vector.shape_cast %170 : vector<1x64x32xf32> to vector<64x32xf32>
    %cst_71 = arith.constant dense<0.000000e+00> : vector<16x32xf32>
    %172 = tpu.matmul %169, %171, %cst_71 {dimension_numbers = #tpu.dot_dimension_numbers<[1], [0], [0], [1], [0, 0, 1, 1], [], []>} : vector<16x64xf32>, vector<64x32xf32>, vector<16x32xf32> -> vector<16x32xf32>
    %c0_72 = arith.constant 0 : index
    %c0_73 = arith.constant 0 : index
    %c0_74 = arith.constant 0 : index
    %173 = vector.load %arg12[%c0_72, %c0_73, %c0_74] : memref<2x1x32xf32, #tpu.memory_space<vmem>>, vector<1x1x32xf32>
    %174 = vector.shape_cast %173 : vector<1x1x32xf32> to vector<1x32xf32>
    %175 = vector.broadcast %174 : vector<1x32xf32> to vector<16x32xf32>
    %176 = arith.addf %172, %175 : vector<16x32xf32>
    %177 = arith.addf %160, %176 : vector<16x32xf32>
    %c0_75 = arith.constant 0 : index
    %c0_76 = arith.constant 0 : index
    %c0_77 = arith.constant 0 : index
    %178 = vector.load %arg13[%c0_75, %c0_76, %c0_77] : memref<2x1x32xf32, #tpu.memory_space<vmem>>, vector<1x1x32xf32>
    %179 = vector.shape_cast %178 : vector<1x1x32xf32> to vector<1x32xf32>
    %c0_78 = arith.constant 0 : index
    %c0_79 = arith.constant 0 : index
    %c0_80 = arith.constant 0 : index
    %180 = vector.load %arg14[%c0_78, %c0_79, %c0_80] : memref<2x1x32xf32, #tpu.memory_space<vmem>>, vector<1x1x32xf32>
    %181 = vector.shape_cast %180 : vector<1x1x32xf32> to vector<1x32xf32>
    %cst_81 = arith.constant dense<0.000000e+00> : vector<16xf32>
    %182 = vector.multi_reduction <add>, %177, %cst_81 [1] : vector<16x32xf32> to vector<16xf32>
    %183 = vector.shape_cast %182 : vector<16xf32> to vector<16x1xf32>
    %cst_82 = arith.constant 3.200000e+01 : f32
    %184 = vector.broadcast %cst_82 : f32 to vector<16x1xf32>
    %185 = arith.divf %183, %184 : vector<16x1xf32>
    %186 = vector.broadcast %185 : vector<16x1xf32> to vector<16x32xf32>
    %187 = arith.subf %177, %186 : vector<16x32xf32>
    %188 = arith.mulf %187, %187 : vector<16x32xf32>
    %cst_83 = arith.constant dense<0.000000e+00> : vector<16xf32>
    %189 = vector.multi_reduction <add>, %188, %cst_83 [1] : vector<16x32xf32> to vector<16xf32>
    %190 = vector.shape_cast %189 : vector<16xf32> to vector<16x1xf32>
    %cst_84 = arith.constant 3.200000e+01 : f32
    %191 = vector.broadcast %cst_84 : f32 to vector<16x1xf32>
    %192 = arith.divf %190, %191 : vector<16x1xf32>
    %193 = vector.broadcast %185 : vector<16x1xf32> to vector<16x32xf32>
    %194 = arith.subf %177, %193 : vector<16x32xf32>
    %cst_85 = arith.constant 9.99999997E-7 : f32
    %195 = vector.broadcast %cst_85 : f32 to vector<16x1xf32>
    %196 = arith.addf %192, %195 : vector<16x1xf32>
    %197 = math.rsqrt %196 : vector<16x1xf32>
    %198 = vector.broadcast %197 : vector<16x1xf32> to vector<16x32xf32>
    %199 = arith.mulf %194, %198 : vector<16x32xf32>
    %200 = vector.broadcast %179 : vector<1x32xf32> to vector<16x32xf32>
    %201 = arith.mulf %199, %200 : vector<16x32xf32>
    %202 = vector.broadcast %181 : vector<1x32xf32> to vector<16x32xf32>
    %203 = arith.addf %201, %202 : vector<16x32xf32>
    %c1 = arith.constant 1 : index
    %c0_86 = arith.constant 0 : index
    %c0_87 = arith.constant 0 : index
    %204 = vector.load %arg4[%c1, %c0_86, %c0_87] : memref<2x32x96xf32, #tpu.memory_space<vmem>>, vector<1x32x96xf32>
    %205 = vector.shape_cast %204 : vector<1x32x96xf32> to vector<32x96xf32>
    %c1_88 = arith.constant 1 : index
    %c0_89 = arith.constant 0 : index
    %c0_90 = arith.constant 0 : index
    %206 = vector.load %arg5[%c1_88, %c0_89, %c0_90] : memref<2x32x32xf32, #tpu.memory_space<vmem>>, vector<1x32x32xf32>
    %207 = vector.shape_cast %206 : vector<1x32x32xf32> to vector<32x32xf32>
    %cst_91 = arith.constant dense<0.000000e+00> : vector<16x96xf32>
    %208 = tpu.matmul %203, %205, %cst_91 {dimension_numbers = #tpu.dot_dimension_numbers<[1], [0], [0], [1], [0, 0, 1, 1], [], []>} : vector<16x32xf32>, vector<32x96xf32>, vector<16x96xf32> -> vector<16x96xf32>
    %209 = vector.extract_strided_slice %208 {offsets = [0, 0], sizes = [16, 32], strides = [1, 1]} : vector<16x96xf32> to vector<16x32xf32>
    %cst_92 = arith.constant 0.353553385 : f32
    %210 = vector.broadcast %cst_92 : f32 to vector<16x32xf32>
    %211 = arith.mulf %209, %210 : vector<16x32xf32>
    %212 = vector.extract_strided_slice %208 {offsets = [0, 32], sizes = [16, 32], strides = [1, 1]} : vector<16x96xf32> to vector<16x32xf32>
    %213 = vector.extract_strided_slice %208 {offsets = [0, 64], sizes = [16, 32], strides = [1, 1]} : vector<16x96xf32> to vector<16x32xf32>
    %cst_93 = arith.constant 0.000000e+00 : f32
    %214 = vector.broadcast %cst_93 : f32 to vector<16x32xf32>
    %215 = vector.extract_strided_slice %211 {offsets = [0, 0], sizes = [16, 8], strides = [1, 1]} : vector<16x32xf32> to vector<16x8xf32>
    %216 = vector.extract_strided_slice %212 {offsets = [0, 0], sizes = [16, 8], strides = [1, 1]} : vector<16x32xf32> to vector<16x8xf32>
    %cst_94 = arith.constant dense<0.000000e+00> : vector<16x16xf32>
    %217 = tpu.matmul %215, %216, %cst_94 {dimension_numbers = #tpu.dot_dimension_numbers<[1], [1], [0], [0], [0, 0, 1, 0], [], []>} : vector<16x8xf32>, vector<16x8xf32>, vector<16x16xf32> -> vector<16x16xf32>
    %cst_95 = arith.constant -1.000000e+30 : f32
    %218 = vector.broadcast %cst_95 : f32 to vector<16x16xf32>
    %219 = arith.select %38, %217, %218 : vector<16x16xi1>, vector<16x16xf32>
    %cst_96 = arith.constant dense<0xFF800000> : vector<16xf32>
    %220 = vector.multi_reduction <maximumf>, %219, %cst_96 [1] : vector<16x16xf32> to vector<16xf32>
    %221 = vector.shape_cast %220 : vector<16xf32> to vector<16x1xf32>
    %222 = vector.broadcast %221 : vector<16x1xf32> to vector<16x16xf32>
    %223 = arith.subf %219, %222 : vector<16x16xf32>
    %224 = math.exp %223 : vector<16x16xf32>
    %cst_97 = arith.constant dense<0.000000e+00> : vector<16xf32>
    %225 = vector.multi_reduction <add>, %224, %cst_97 [1] : vector<16x16xf32> to vector<16xf32>
    %226 = vector.shape_cast %225 : vector<16xf32> to vector<16x1xf32>
    %227 = tpu.reciprocal %226 {approx = true} : vector<16x1xf32> -> vector<16x1xf32>
    %228 = vector.broadcast %227 : vector<16x1xf32> to vector<16x16xf32>
    %229 = arith.mulf %224, %228 : vector<16x16xf32>
    %230 = vector.extract_strided_slice %213 {offsets = [0, 0], sizes = [16, 8], strides = [1, 1]} : vector<16x32xf32> to vector<16x8xf32>
    %cst_98 = arith.constant dense<0.000000e+00> : vector<16x8xf32>
    %231 = tpu.matmul %229, %230, %cst_98 {dimension_numbers = #tpu.dot_dimension_numbers<[1], [0], [0], [1], [0, 0, 1, 1], [], []>} : vector<16x16xf32>, vector<16x8xf32>, vector<16x8xf32> -> vector<16x8xf32>
    %232 = vector.extract_strided_slice %207 {offsets = [0, 0], sizes = [8, 32], strides = [1, 1]} : vector<32x32xf32> to vector<8x32xf32>
    %cst_99 = arith.constant dense<0.000000e+00> : vector<16x32xf32>
    %233 = tpu.matmul %231, %232, %cst_99 {dimension_numbers = #tpu.dot_dimension_numbers<[1], [0], [0], [1], [0, 0, 1, 1], [], []>} : vector<16x8xf32>, vector<8x32xf32>, vector<16x32xf32> -> vector<16x32xf32>
    %234 = arith.addf %214, %233 : vector<16x32xf32>
    %235 = vector.extract_strided_slice %211 {offsets = [0, 8], sizes = [16, 8], strides = [1, 1]} : vector<16x32xf32> to vector<16x8xf32>
    %236 = vector.extract_strided_slice %212 {offsets = [0, 8], sizes = [16, 8], strides = [1, 1]} : vector<16x32xf32> to vector<16x8xf32>
    %cst_100 = arith.constant dense<0.000000e+00> : vector<16x16xf32>
    %237 = tpu.matmul %235, %236, %cst_100 {dimension_numbers = #tpu.dot_dimension_numbers<[1], [1], [0], [0], [0, 0, 1, 0], [], []>} : vector<16x8xf32>, vector<16x8xf32>, vector<16x16xf32> -> vector<16x16xf32>
    %cst_101 = arith.constant -1.000000e+30 : f32
    %238 = vector.broadcast %cst_101 : f32 to vector<16x16xf32>
    %239 = arith.select %38, %237, %238 : vector<16x16xi1>, vector<16x16xf32>
    %cst_102 = arith.constant dense<0xFF800000> : vector<16xf32>
    %240 = vector.multi_reduction <maximumf>, %239, %cst_102 [1] : vector<16x16xf32> to vector<16xf32>
    %241 = vector.shape_cast %240 : vector<16xf32> to vector<16x1xf32>
    %242 = vector.broadcast %241 : vector<16x1xf32> to vector<16x16xf32>
    %243 = arith.subf %239, %242 : vector<16x16xf32>
    %244 = math.exp %243 : vector<16x16xf32>
    %cst_103 = arith.constant dense<0.000000e+00> : vector<16xf32>
    %245 = vector.multi_reduction <add>, %244, %cst_103 [1] : vector<16x16xf32> to vector<16xf32>
    %246 = vector.shape_cast %245 : vector<16xf32> to vector<16x1xf32>
    %247 = tpu.reciprocal %246 {approx = true} : vector<16x1xf32> -> vector<16x1xf32>
    %248 = vector.broadcast %247 : vector<16x1xf32> to vector<16x16xf32>
    %249 = arith.mulf %244, %248 : vector<16x16xf32>
    %250 = vector.extract_strided_slice %213 {offsets = [0, 8], sizes = [16, 8], strides = [1, 1]} : vector<16x32xf32> to vector<16x8xf32>
    %cst_104 = arith.constant dense<0.000000e+00> : vector<16x8xf32>
    %251 = tpu.matmul %249, %250, %cst_104 {dimension_numbers = #tpu.dot_dimension_numbers<[1], [0], [0], [1], [0, 0, 1, 1], [], []>} : vector<16x16xf32>, vector<16x8xf32>, vector<16x8xf32> -> vector<16x8xf32>
    %252 = vector.extract_strided_slice %207 {offsets = [8, 0], sizes = [8, 32], strides = [1, 1]} : vector<32x32xf32> to vector<8x32xf32>
    %cst_105 = arith.constant dense<0.000000e+00> : vector<16x32xf32>
    %253 = tpu.matmul %251, %252, %cst_105 {dimension_numbers = #tpu.dot_dimension_numbers<[1], [0], [0], [1], [0, 0, 1, 1], [], []>} : vector<16x8xf32>, vector<8x32xf32>, vector<16x32xf32> -> vector<16x32xf32>
    %254 = arith.addf %234, %253 : vector<16x32xf32>
    %255 = vector.extract_strided_slice %211 {offsets = [0, 16], sizes = [16, 8], strides = [1, 1]} : vector<16x32xf32> to vector<16x8xf32>
    %256 = vector.extract_strided_slice %212 {offsets = [0, 16], sizes = [16, 8], strides = [1, 1]} : vector<16x32xf32> to vector<16x8xf32>
    %cst_106 = arith.constant dense<0.000000e+00> : vector<16x16xf32>
    %257 = tpu.matmul %255, %256, %cst_106 {dimension_numbers = #tpu.dot_dimension_numbers<[1], [1], [0], [0], [0, 0, 1, 0], [], []>} : vector<16x8xf32>, vector<16x8xf32>, vector<16x16xf32> -> vector<16x16xf32>
    %cst_107 = arith.constant -1.000000e+30 : f32
    %258 = vector.broadcast %cst_107 : f32 to vector<16x16xf32>
    %259 = arith.select %38, %257, %258 : vector<16x16xi1>, vector<16x16xf32>
    %cst_108 = arith.constant dense<0xFF800000> : vector<16xf32>
    %260 = vector.multi_reduction <maximumf>, %259, %cst_108 [1] : vector<16x16xf32> to vector<16xf32>
    %261 = vector.shape_cast %260 : vector<16xf32> to vector<16x1xf32>
    %262 = vector.broadcast %261 : vector<16x1xf32> to vector<16x16xf32>
    %263 = arith.subf %259, %262 : vector<16x16xf32>
    %264 = math.exp %263 : vector<16x16xf32>
    %cst_109 = arith.constant dense<0.000000e+00> : vector<16xf32>
    %265 = vector.multi_reduction <add>, %264, %cst_109 [1] : vector<16x16xf32> to vector<16xf32>
    %266 = vector.shape_cast %265 : vector<16xf32> to vector<16x1xf32>
    %267 = tpu.reciprocal %266 {approx = true} : vector<16x1xf32> -> vector<16x1xf32>
    %268 = vector.broadcast %267 : vector<16x1xf32> to vector<16x16xf32>
    %269 = arith.mulf %264, %268 : vector<16x16xf32>
    %270 = vector.extract_strided_slice %213 {offsets = [0, 16], sizes = [16, 8], strides = [1, 1]} : vector<16x32xf32> to vector<16x8xf32>
    %cst_110 = arith.constant dense<0.000000e+00> : vector<16x8xf32>
    %271 = tpu.matmul %269, %270, %cst_110 {dimension_numbers = #tpu.dot_dimension_numbers<[1], [0], [0], [1], [0, 0, 1, 1], [], []>} : vector<16x16xf32>, vector<16x8xf32>, vector<16x8xf32> -> vector<16x8xf32>
    %272 = vector.extract_strided_slice %207 {offsets = [16, 0], sizes = [8, 32], strides = [1, 1]} : vector<32x32xf32> to vector<8x32xf32>
    %cst_111 = arith.constant dense<0.000000e+00> : vector<16x32xf32>
    %273 = tpu.matmul %271, %272, %cst_111 {dimension_numbers = #tpu.dot_dimension_numbers<[1], [0], [0], [1], [0, 0, 1, 1], [], []>} : vector<16x8xf32>, vector<8x32xf32>, vector<16x32xf32> -> vector<16x32xf32>
    %274 = arith.addf %254, %273 : vector<16x32xf32>
    %275 = vector.extract_strided_slice %211 {offsets = [0, 24], sizes = [16, 8], strides = [1, 1]} : vector<16x32xf32> to vector<16x8xf32>
    %276 = vector.extract_strided_slice %212 {offsets = [0, 24], sizes = [16, 8], strides = [1, 1]} : vector<16x32xf32> to vector<16x8xf32>
    %cst_112 = arith.constant dense<0.000000e+00> : vector<16x16xf32>
    %277 = tpu.matmul %275, %276, %cst_112 {dimension_numbers = #tpu.dot_dimension_numbers<[1], [1], [0], [0], [0, 0, 1, 0], [], []>} : vector<16x8xf32>, vector<16x8xf32>, vector<16x16xf32> -> vector<16x16xf32>
    %cst_113 = arith.constant -1.000000e+30 : f32
    %278 = vector.broadcast %cst_113 : f32 to vector<16x16xf32>
    %279 = arith.select %38, %277, %278 : vector<16x16xi1>, vector<16x16xf32>
    %cst_114 = arith.constant dense<0xFF800000> : vector<16xf32>
    %280 = vector.multi_reduction <maximumf>, %279, %cst_114 [1] : vector<16x16xf32> to vector<16xf32>
    %281 = vector.shape_cast %280 : vector<16xf32> to vector<16x1xf32>
    %282 = vector.broadcast %281 : vector<16x1xf32> to vector<16x16xf32>
    %283 = arith.subf %279, %282 : vector<16x16xf32>
    %284 = math.exp %283 : vector<16x16xf32>
    %cst_115 = arith.constant dense<0.000000e+00> : vector<16xf32>
    %285 = vector.multi_reduction <add>, %284, %cst_115 [1] : vector<16x16xf32> to vector<16xf32>
    %286 = vector.shape_cast %285 : vector<16xf32> to vector<16x1xf32>
    %287 = tpu.reciprocal %286 {approx = true} : vector<16x1xf32> -> vector<16x1xf32>
    %288 = vector.broadcast %287 : vector<16x1xf32> to vector<16x16xf32>
    %289 = arith.mulf %284, %288 : vector<16x16xf32>
    %290 = vector.extract_strided_slice %213 {offsets = [0, 24], sizes = [16, 8], strides = [1, 1]} : vector<16x32xf32> to vector<16x8xf32>
    %cst_116 = arith.constant dense<0.000000e+00> : vector<16x8xf32>
    %291 = tpu.matmul %289, %290, %cst_116 {dimension_numbers = #tpu.dot_dimension_numbers<[1], [0], [0], [1], [0, 0, 1, 1], [], []>} : vector<16x16xf32>, vector<16x8xf32>, vector<16x8xf32> -> vector<16x8xf32>
    %292 = vector.extract_strided_slice %207 {offsets = [24, 0], sizes = [8, 32], strides = [1, 1]} : vector<32x32xf32> to vector<8x32xf32>
    %cst_117 = arith.constant dense<0.000000e+00> : vector<16x32xf32>
    %293 = tpu.matmul %291, %292, %cst_117 {dimension_numbers = #tpu.dot_dimension_numbers<[1], [0], [0], [1], [0, 0, 1, 1], [], []>} : vector<16x8xf32>, vector<8x32xf32>, vector<16x32xf32> -> vector<16x32xf32>
    %294 = arith.addf %274, %293 : vector<16x32xf32>
    %c1_118 = arith.constant 1 : index
    %c0_119 = arith.constant 0 : index
    %c0_120 = arith.constant 0 : index
    %295 = vector.load %arg6[%c1_118, %c0_119, %c0_120] : memref<2x1x32xf32, #tpu.memory_space<vmem>>, vector<1x1x32xf32>
    %296 = vector.shape_cast %295 : vector<1x1x32xf32> to vector<1x32xf32>
    %297 = vector.broadcast %296 : vector<1x32xf32> to vector<16x32xf32>
    %298 = arith.addf %294, %297 : vector<16x32xf32>
    %299 = arith.addf %203, %298 : vector<16x32xf32>
    %c1_121 = arith.constant 1 : index
    %c0_122 = arith.constant 0 : index
    %c0_123 = arith.constant 0 : index
    %300 = vector.load %arg7[%c1_121, %c0_122, %c0_123] : memref<2x1x32xf32, #tpu.memory_space<vmem>>, vector<1x1x32xf32>
    %301 = vector.shape_cast %300 : vector<1x1x32xf32> to vector<1x32xf32>
    %c1_124 = arith.constant 1 : index
    %c0_125 = arith.constant 0 : index
    %c0_126 = arith.constant 0 : index
    %302 = vector.load %arg8[%c1_124, %c0_125, %c0_126] : memref<2x1x32xf32, #tpu.memory_space<vmem>>, vector<1x1x32xf32>
    %303 = vector.shape_cast %302 : vector<1x1x32xf32> to vector<1x32xf32>
    %cst_127 = arith.constant dense<0.000000e+00> : vector<16xf32>
    %304 = vector.multi_reduction <add>, %299, %cst_127 [1] : vector<16x32xf32> to vector<16xf32>
    %305 = vector.shape_cast %304 : vector<16xf32> to vector<16x1xf32>
    %cst_128 = arith.constant 3.200000e+01 : f32
    %306 = vector.broadcast %cst_128 : f32 to vector<16x1xf32>
    %307 = arith.divf %305, %306 : vector<16x1xf32>
    %308 = vector.broadcast %307 : vector<16x1xf32> to vector<16x32xf32>
    %309 = arith.subf %299, %308 : vector<16x32xf32>
    %310 = arith.mulf %309, %309 : vector<16x32xf32>
    %cst_129 = arith.constant dense<0.000000e+00> : vector<16xf32>
    %311 = vector.multi_reduction <add>, %310, %cst_129 [1] : vector<16x32xf32> to vector<16xf32>
    %312 = vector.shape_cast %311 : vector<16xf32> to vector<16x1xf32>
    %cst_130 = arith.constant 3.200000e+01 : f32
    %313 = vector.broadcast %cst_130 : f32 to vector<16x1xf32>
    %314 = arith.divf %312, %313 : vector<16x1xf32>
    %315 = vector.broadcast %307 : vector<16x1xf32> to vector<16x32xf32>
    %316 = arith.subf %299, %315 : vector<16x32xf32>
    %cst_131 = arith.constant 9.99999997E-7 : f32
    %317 = vector.broadcast %cst_131 : f32 to vector<16x1xf32>
    %318 = arith.addf %314, %317 : vector<16x1xf32>
    %319 = math.rsqrt %318 : vector<16x1xf32>
    %320 = vector.broadcast %319 : vector<16x1xf32> to vector<16x32xf32>
    %321 = arith.mulf %316, %320 : vector<16x32xf32>
    %322 = vector.broadcast %301 : vector<1x32xf32> to vector<16x32xf32>
    %323 = arith.mulf %321, %322 : vector<16x32xf32>
    %324 = vector.broadcast %303 : vector<1x32xf32> to vector<16x32xf32>
    %325 = arith.addf %323, %324 : vector<16x32xf32>
    %c1_132 = arith.constant 1 : index
    %c0_133 = arith.constant 0 : index
    %c0_134 = arith.constant 0 : index
    %326 = vector.load %arg9[%c1_132, %c0_133, %c0_134] : memref<2x32x64xf32, #tpu.memory_space<vmem>>, vector<1x32x64xf32>
    %327 = vector.shape_cast %326 : vector<1x32x64xf32> to vector<32x64xf32>
    %cst_135 = arith.constant dense<0.000000e+00> : vector<16x64xf32>
    %328 = tpu.matmul %325, %327, %cst_135 {dimension_numbers = #tpu.dot_dimension_numbers<[1], [0], [0], [1], [0, 0, 1, 1], [], []>} : vector<16x32xf32>, vector<32x64xf32>, vector<16x64xf32> -> vector<16x64xf32>
    %c1_136 = arith.constant 1 : index
    %c0_137 = arith.constant 0 : index
    %c0_138 = arith.constant 0 : index
    %329 = vector.load %arg10[%c1_136, %c0_137, %c0_138] : memref<2x1x64xf32, #tpu.memory_space<vmem>>, vector<1x1x64xf32>
    %330 = vector.shape_cast %329 : vector<1x1x64xf32> to vector<1x64xf32>
    %331 = vector.broadcast %330 : vector<1x64xf32> to vector<16x64xf32>
    %332 = arith.addf %328, %331 : vector<16x64xf32>
    %cst_139 = arith.constant 0.000000e+00 : f32
    %333 = vector.broadcast %cst_139 : f32 to vector<16x64xf32>
    %334 = arith.maximumf %332, %333 : vector<16x64xf32>
    %c1_140 = arith.constant 1 : index
    %c0_141 = arith.constant 0 : index
    %c0_142 = arith.constant 0 : index
    %335 = vector.load %arg11[%c1_140, %c0_141, %c0_142] : memref<2x64x32xf32, #tpu.memory_space<vmem>>, vector<1x64x32xf32>
    %336 = vector.shape_cast %335 : vector<1x64x32xf32> to vector<64x32xf32>
    %cst_143 = arith.constant dense<0.000000e+00> : vector<16x32xf32>
    %337 = tpu.matmul %334, %336, %cst_143 {dimension_numbers = #tpu.dot_dimension_numbers<[1], [0], [0], [1], [0, 0, 1, 1], [], []>} : vector<16x64xf32>, vector<64x32xf32>, vector<16x32xf32> -> vector<16x32xf32>
    %c1_144 = arith.constant 1 : index
    %c0_145 = arith.constant 0 : index
    %c0_146 = arith.constant 0 : index
    %338 = vector.load %arg12[%c1_144, %c0_145, %c0_146] : memref<2x1x32xf32, #tpu.memory_space<vmem>>, vector<1x1x32xf32>
    %339 = vector.shape_cast %338 : vector<1x1x32xf32> to vector<1x32xf32>
    %340 = vector.broadcast %339 : vector<1x32xf32> to vector<16x32xf32>
    %341 = arith.addf %337, %340 : vector<16x32xf32>
    %342 = arith.addf %325, %341 : vector<16x32xf32>
    %c1_147 = arith.constant 1 : index
    %c0_148 = arith.constant 0 : index
    %c0_149 = arith.constant 0 : index
    %343 = vector.load %arg13[%c1_147, %c0_148, %c0_149] : memref<2x1x32xf32, #tpu.memory_space<vmem>>, vector<1x1x32xf32>
    %344 = vector.shape_cast %343 : vector<1x1x32xf32> to vector<1x32xf32>
    %c1_150 = arith.constant 1 : index
    %c0_151 = arith.constant 0 : index
    %c0_152 = arith.constant 0 : index
    %345 = vector.load %arg14[%c1_150, %c0_151, %c0_152] : memref<2x1x32xf32, #tpu.memory_space<vmem>>, vector<1x1x32xf32>
    %346 = vector.shape_cast %345 : vector<1x1x32xf32> to vector<1x32xf32>
    %cst_153 = arith.constant dense<0.000000e+00> : vector<16xf32>
    %347 = vector.multi_reduction <add>, %342, %cst_153 [1] : vector<16x32xf32> to vector<16xf32>
    %348 = vector.shape_cast %347 : vector<16xf32> to vector<16x1xf32>
    %cst_154 = arith.constant 3.200000e+01 : f32
    %349 = vector.broadcast %cst_154 : f32 to vector<16x1xf32>
    %350 = arith.divf %348, %349 : vector<16x1xf32>
    %351 = vector.broadcast %350 : vector<16x1xf32> to vector<16x32xf32>
    %352 = arith.subf %342, %351 : vector<16x32xf32>
    %353 = arith.mulf %352, %352 : vector<16x32xf32>
    %cst_155 = arith.constant dense<0.000000e+00> : vector<16xf32>
    %354 = vector.multi_reduction <add>, %353, %cst_155 [1] : vector<16x32xf32> to vector<16xf32>
    %355 = vector.shape_cast %354 : vector<16xf32> to vector<16x1xf32>
    %cst_156 = arith.constant 3.200000e+01 : f32
    %356 = vector.broadcast %cst_156 : f32 to vector<16x1xf32>
    %357 = arith.divf %355, %356 : vector<16x1xf32>
    %358 = vector.broadcast %350 : vector<16x1xf32> to vector<16x32xf32>
    %359 = arith.subf %342, %358 : vector<16x32xf32>
    %cst_157 = arith.constant 9.99999997E-7 : f32
    %360 = vector.broadcast %cst_157 : f32 to vector<16x1xf32>
    %361 = arith.addf %357, %360 : vector<16x1xf32>
    %362 = math.rsqrt %361 : vector<16x1xf32>
    %363 = vector.broadcast %362 : vector<16x1xf32> to vector<16x32xf32>
    %364 = arith.mulf %359, %363 : vector<16x32xf32>
    %365 = vector.broadcast %344 : vector<1x32xf32> to vector<16x32xf32>
    %366 = arith.mulf %364, %365 : vector<16x32xf32>
    %367 = vector.broadcast %346 : vector<1x32xf32> to vector<16x32xf32>
    %368 = arith.addf %366, %367 : vector<16x32xf32>
    %369 = vector.shape_cast %368 : vector<16x32xf32> to vector<2x8x32xf32>
    %cst_158 = arith.constant dense<0.000000e+00> : vector<2x32xf32>
    %370 = vector.multi_reduction <add>, %369, %cst_158 [1] : vector<2x8x32xf32> to vector<2x32xf32>
    %cst_159 = arith.constant 1.250000e-01 : f32
    %371 = vector.broadcast %cst_159 : f32 to vector<2x32xf32>
    %372 = arith.mulf %370, %371 : vector<2x32xf32>
    %c0_160 = arith.constant 0 : index
    %c0_161 = arith.constant 0 : index
    %373 = vector.load %arg15[%c0_160, %c0_161] : memref<32x16xf32, #tpu.memory_space<vmem>>, vector<32x16xf32>
    %cst_162 = arith.constant dense<0.000000e+00> : vector<2x16xf32>
    %374 = tpu.matmul %372, %373, %cst_162 {dimension_numbers = #tpu.dot_dimension_numbers<[1], [0], [0], [1], [0, 0, 1, 1], [], []>} : vector<2x32xf32>, vector<32x16xf32>, vector<2x16xf32> -> vector<2x16xf32>
    %c0_163 = arith.constant 0 : index
    %c0_164 = arith.constant 0 : index
    %375 = vector.load %arg16[%c0_163, %c0_164] : memref<1x16xf32, #tpu.memory_space<vmem>>, vector<1x16xf32>
    %376 = vector.broadcast %375 : vector<1x16xf32> to vector<2x16xf32>
    %377 = arith.addf %374, %376 : vector<2x16xf32>
    %c0_165 = arith.constant 0 : index
    %c0_166 = arith.constant 0 : index
    %378 = vector.load %arg17[%c0_165, %c0_166] : memref<2x16xf32, #tpu.memory_space<vmem>>, vector<2x16xf32>
    tpu.vector_store %arg17[%c0_165, %c0_166], %377 {strides = array<i32>} : memref<2x16xf32, #tpu.memory_space<vmem>>, vector<2x16xf32>,
    return
  }
}

</mosaic_0001>

<llo_original>
// kernel: tpu_custom_call.1
$region0: #{tpu_custom_call.1}
  #allocation0 [shape = 'u32[]', space=smem, size = 0x4, offset = 0x4, fixed_abs, tag = 'smem constant byte address 0x4 - core index']
  #allocation1 [shape = 'u32[72,128]{1,0:T(1,128)}', space=vmem, size = 0x9000, scoped, tag = 'internal scratch']
  %s0 = inlined_call_operand.vmem [shape: s32[16,1], index: 0, kind: input, shape index: {}]
  %s1 = inlined_call_operand.vmem [shape: f32[50,32], index: 1, kind: input, shape index: {}]
  %s2 = inlined_call_operand.vmem [shape: f32[1,32], index: 2, kind: input, shape index: {}]
  %s3 = inlined_call_operand.vmem [shape: f32[1,32], index: 3, kind: input, shape index: {}]
  %s4 = inlined_call_operand.vmem [shape: f32[2,32,96], index: 4, kind: input, shape index: {}]
  %s5 = inlined_call_operand.vmem [shape: f32[2,32,32], index: 5, kind: input, shape index: {}]
  %s6 = inlined_call_operand.vmem [shape: f32[2,1,32], index: 6, kind: input, shape index: {}]
  %s7 = inlined_call_operand.vmem [shape: f32[2,1,32], index: 7, kind: input, shape index: {}]
  %s8 = inlined_call_operand.vmem [shape: f32[2,1,32], index: 8, kind: input, shape index: {}]
  %s9 = inlined_call_operand.vmem [shape: f32[2,32,64], index: 9, kind: input, shape index: {}]
  %s10 = inlined_call_operand.vmem [shape: f32[2,1,64], index: 10, kind: input, shape index: {}]
  %s11 = inlined_call_operand.vmem [shape: f32[2,64,32], index: 11, kind: input, shape index: {}]
  %s12 = inlined_call_operand.vmem [shape: f32[2,1,32], index: 12, kind: input, shape index: {}]
  %s13 = inlined_call_operand.vmem [shape: f32[2,1,32], index: 13, kind: input, shape index: {}]
  %s14 = inlined_call_operand.vmem [shape: f32[2,1,32], index: 14, kind: input, shape index: {}]
  %s15 = inlined_call_operand.vmem [shape: f32[32,16], index: 15, kind: input, shape index: {}]
  %s16 = inlined_call_operand.vmem [shape: f32[1,16], index: 16, kind: input, shape index: {}]
  %s17 = inlined_call_operand.hbm [shape: f32[2,16], index: 17, kind: output, shape index: {}]
  %s18 = sld [smem:[#allocation0]]
  $region78: #{tpu_custom_call.1} parent=0
    _
  %s20 = ssub.s32 1, %s18
  %s21 = scalar_select 0, %s20, %s18
  $region1: #{tpu_custom_call.1} parent=0
    #allocation2 [shape = 'u8[1024]{0}', space=vmem, size = 0x400, scoped, tag = 'output window, operand 0, single buffered']
    #allocation3 [shape = 's32[1]{0}', space=sflag, size = 0x4, scoped, tag = 'scoped memory for tpu_custom_call.1']
    %22 = vsyncpa [#allocation3], 0
    // Predicated region
    $region2: #{tpu_custom_call.1} parent=1 // pred_check
      _
    $region3: #{tpu_custom_call.1} parent=1 // pred_check_branch
      %24 = sbr.rel (0) target = $region5
    $region4: #{tpu_custom_call.1} parent=1 // pred_region
      _
    $region5: #{tpu_custom_call.1} parent=1 // pred_fallthru
      _
    // Predicated region
    $region6: #{tpu_custom_call.1} parent=1 // pred_check
      _
    $region7: #{tpu_custom_call.1} parent=1 // pred_check_branch
      %26 = sbr.rel (0) target = $region9
    $region8: #{tpu_custom_call.1} parent=1 // pred_region
      _
    $region9: #{tpu_custom_call.1} parent=1 // pred_fallthru
      _
    // Predicated region
    $region10: #{tpu_custom_call.1} parent=1 // pred_check
      _
    $region11: #{tpu_custom_call.1} parent=1 // pred_check_branch
      %28 = sbr.rel (0) target = $region13
    $region12: #{tpu_custom_call.1} parent=1 // pred_region
      _
    $region13: #{tpu_custom_call.1} parent=1 // pred_fallthru
      _
    // Predicated region
    $region14: #{tpu_custom_call.1} parent=1 // pred_check
      _
    $region15: #{tpu_custom_call.1} parent=1 // pred_check_branch
      %30 = sbr.rel (0) target = $region17
    $region16: #{tpu_custom_call.1} parent=1 // pred_region
      _
    $region17: #{tpu_custom_call.1} parent=1 // pred_fallthru
      _
    // Predicated region
    $region18: #{tpu_custom_call.1} parent=1 // pred_check
      _
    $region19: #{tpu_custom_call.1} parent=1 // pred_check_branch
      %32 = sbr.rel (0) target = $region21
    $region20: #{tpu_custom_call.1} parent=1 // pred_region
      _
    $region21: #{tpu_custom_call.1} parent=1 // pred_fallthru
      _
    // Predicated region
    $region22: #{tpu_custom_call.1} parent=1 // pred_check
      _
    $region23: #{tpu_custom_call.1} parent=1 // pred_check_branch
      %34 = sbr.rel (0) target = $region25
    $region24: #{tpu_custom_call.1} parent=1 // pred_region
      _
    $region25: #{tpu_custom_call.1} parent=1 // pred_fallthru
      _
    // Predicated region
    $region26: #{tpu_custom_call.1} parent=1 // pred_check
      _
    $region27: #{tpu_custom_call.1} parent=1 // pred_check_branch
      %36 = sbr.rel (0) target = $region29
    $region28: #{tpu_custom_call.1} parent=1 // pred_region
      _
    $region29: #{tpu_custom_call.1} parent=1 // pred_fallthru
      _
    // Predicated region
    $region30: #{tpu_custom_call.1} parent=1 // pred_check
      _
    $region31: #{tpu_custom_call.1} parent=1 // pred_check_branch
      %38 = sbr.rel (0) target = $region33
    $region32: #{tpu_custom_call.1} parent=1 // pred_region
      _
    $region33: #{tpu_custom_call.1} parent=1 // pred_fallthru
      _
    // Predicated region
    $region34: #{tpu_custom_call.1} parent=1 // pred_check
      _
    $region35: #{tpu_custom_call.1} parent=1 // pred_check_branch
      %40 = sbr.rel (0) target = $region37
    $region36: #{tpu_custom_call.1} parent=1 // pred_region
      _
    $region37: #{tpu_custom_call.1} parent=1 // pred_fallthru
      _
    // Predicated region
    $region38: #{tpu_custom_call.1} parent=1 // pred_check
      _
    $region39: #{tpu_custom_call.1} parent=1 // pred_check_branch
      %42 = sbr.rel (0) target = $region41
    $region40: #{tpu_custom_call.1} parent=1 // pred_region
      _
    $region41: #{tpu_custom_call.1} parent=1 // pred_fallthru
      _
    // Predicated region
    $region42: #{tpu_custom_call.1} parent=1 // pred_check
      _
    $region43: #{tpu_custom_call.1} parent=1 // pred_check_branch
      %44 = sbr.rel (0) target = $region45
    $region44: #{tpu_custom_call.1} parent=1 // pred_region
      _
    $region45: #{tpu_custom_call.1} parent=1 // pred_fallthru
      _
    // Predicated region
    $region46: #{tpu_custom_call.1} parent=1 // pred_check
      _
    $region47: #{tpu_custom_call.1} parent=1 // pred_check_branch
      %46 = sbr.rel (0) target = $region49
    $region48: #{tpu_custom_call.1} parent=1 // pred_region
      _
    $region49: #{tpu_custom_call.1} parent=1 // pred_fallthru
      _
    // Predicated region
    $region50: #{tpu_custom_call.1} parent=1 // pred_check
      _
    $region51: #{tpu_custom_call.1} parent=1 // pred_check_branch
      %48 = sbr.rel (0) target = $region53
    $region52: #{tpu_custom_call.1} parent=1 // pred_region
      _
    $region53: #{tpu_custom_call.1} parent=1 // pred_fallthru
      _
    // Predicated region
    $region54: #{tpu_custom_call.1} parent=1 // pred_check
      _
    $region55: #{tpu_custom_call.1} parent=1 // pred_check_branch
      %50 = sbr.rel (0) target = $region57
    $region56: #{tpu_custom_call.1} parent=1 // pred_region
      _
    $region57: #{tpu_custom_call.1} parent=1 // pred_fallthru
      _
    // Predicated region
    $region58: #{tpu_custom_call.1} parent=1 // pred_check
      _
    $region59: #{tpu_custom_call.1} parent=1 // pred_check_branch
      %52 = sbr.rel (0) target = $region61
    $region60: #{tpu_custom_call.1} parent=1 // pred_region
      _
    $region61: #{tpu_custom_call.1} parent=1 // pred_fallthru
      _
    // Predicated region
    $region62: #{tpu_custom_call.1} parent=1 // pred_check
      _
    $region63: #{tpu_custom_call.1} parent=1 // pred_check_branch
      %54 = sbr.rel (0) target = $region65
    $region64: #{tpu_custom_call.1} parent=1 // pred_region
      _
    $region65: #{tpu_custom_call.1} parent=1 // pred_fallthru
      _
    // Predicated region
    $region66: #{tpu_custom_call.1} parent=1 // pred_check
      _
    $region67: #{tpu_custom_call.1} parent=1 // pred_check_branch
      %56 = sbr.rel (0) target = $region69
    $region68: #{tpu_custom_call.1} parent=1 // pred_region
      _
    $region69: #{tpu_custom_call.1} parent=1 // pred_fallthru
      _
    %v57 = vld [vmem:[%s0] sm:$0xff]
    %v58 = vld [vmem:[%s0 + $0x8] sm:$0xff]
    %v59 = vlaneseq
    %v60 = vand.u32 %v59, 127
    %61 = vset.pattern.permute.xlu0 0
    %62 = vperm.xlu0 %61, %v57
    %v63 = vpop.permute.xlu0 %62
    %64 = vset.pattern.permute.xlu0 0
    %65 = vperm.xlu0 %64, %v58
    %v66 = vpop.permute.xlu0 %65
    %vm67 = vcmp.eq.s32.totalorder %v60, %v63
    %vm68 = vcmp.eq.s32.totalorder %v60, %v66
    %v69 = vsel %vm67, 1, 0
    %v70 = vsel %vm68, 1, 0
    %v71 = vcvt.s32.f32 %v69
    %v72 = vcvt.s32.f32 %v70
    %v73 = vld [vmem:[%s1] sm:$0xff]
    %v74 = vld [vmem:[%s1 + $0x8] sm:$0xff]
    %v75 = vld [vmem:[%s1 + $0x10] sm:$0xff]
    %v76 = vld [vmem:[%s1 + $0x18] sm:$0xff]
    %v77 = vld [vmem:[%s1 + $0x20] sm:$0xff]
    %v78 = vld [vmem:[%s1 + $0x28] sm:$0xff]
    %v79 = vld [vmem:[%s1 + $0x30] sm:$0x3]
    %vm80 = vcmask 408576
    %v82 = vsel %vm80, %v71, 0
    %v85 = vsel %vm80, %v72, 0
    %vm87 = vcmask 1041408
    %v89 = vsel %vm87, %v79, 0
    %91 = vmatpush.msra.mxu0 0.0
    %92 = vmatpush.msra.mxu0 0.0
    %93 = vmatpush.msra.mxu0 0.0
    %94 = vmatpush.msra.mxu0 0.0
    %95 = vmatpush.msra.mxu0 0.0
    %96 = vmatpush.msra.mxu0 0.0
    %97 = vmatpush.msra.mxu0 0.0
    %98 = vmatpush.msra.mxu0 0.0
    %99 = vmatpush.msra.mxu0 0.0
    %100 = vmatpush.msra.mxu0 %v89
    %101 = vmatpush.msra.mxu0 %v78
    %102 = vmatpush.msra.mxu0 %v77
    %103 = vmatpush.msra.mxu0 %v76
    %104 = vmatpush.msra.mxu0 %v75
    %105 = vmatpush.msra.mxu0 %v74
    %106 = vmatpush.msra.mxu0 %v73
    %107 = vmatmul.f32.gmra.mxu0 %v82
    %v108 = vpop.f32.mrf.mxu0
    %v109 = vadd.f32 0.0, %v108
    %110 = vmatmul.f32.gmra.mxu0 %v85
    %v111 = vpop.f32.mrf.mxu0
    %v112 = vadd.f32 0.0, %v111
    %113 = vdwg.mxu0
    %v114 = vld [vmem:[%s2] sm:$0x1]
    %v115 = vld [vmem:[%s3] sm:$0x1]
    %vm116 = vcmask 261120
    %v117 = vsel %vm116, %v109, 0.0
    %118 = vadd.xlane.f32.xlu0 %v117
    %v119 = vpop.xlane.xlu0 %118
    %v120 = vsel %vm116, %v112, 0.0
    %121 = vadd.xlane.f32.xlu0 %v120
    %v122 = vpop.xlane.xlu0 %121
    %v123 = vrcp.pop 32.0
    %v124 = vmul.f32 32.0, %v123
    %v125 = vsub.f32 1.0, %v124
    %v126 = vmul.f32 %v123, %v125
    %v127 = vadd.f32 %v123, %v126
    %vm128 = vweird.f32 %v123
    %v129 = vsel %vm128, %v123, %v127
    %v130 = vmul.f32 %v119, %v129
    %v131 = vmul.f32 %v122, %v129
    %v132 = vsub.f32 %v109, %v130
    %v133 = vsub.f32 %v112, %v131
    %v134 = vmul.f32 %v132, %v132
    %v135 = vmul.f32 %v133, %v133
    %v136 = vsel %vm116, %v134, 0.0
    %137 = vadd.xlane.f32.xlu0 %v136
    %v138 = vpop.xlane.xlu0 %137
    %v139 = vsel %vm116, %v135, 0.0
    %140 = vadd.xlane.f32.xlu0 %v139
    %v141 = vpop.xlane.xlu0 %140
    %v142 = vmul.f32 %v138, %v129
    %v143 = vmul.f32 %v141, %v129
    %v144 = vadd.f32 %v142, 1e-12
    %v145 = vadd.f32 %v143, 1e-12
    %v146 = vrsqrt.pop %v144
    %v147 = vmul.f32 %v146, %v144
    %v148 = vmul.f32 %v147, %v146
    %v149 = vmul.f32 0.5, %v148
    %v150 = vsub.f32 1.5, %v149
    %v151 = vmul.f32 %v146, %v150
    %vm152 = vweird.f32 %v144
    %vm153 = vweird.f32 %v146
    %vm154 = vmor %vm152, %vm153
    %v155 = vsel %vm154, %v146, %v151
    %v156 = vrsqrt.pop %v145
    %v157 = vmul.f32 %v156, %v145
    %v158 = vmul.f32 %v157, %v156
    %v159 = vmul.f32 0.5, %v158
    %v160 = vsub.f32 1.5, %v159
    %v161 = vmul.f32 %v156, %v160
    %vm162 = vweird.f32 %v145
    %vm163 = vweird.f32 %v156
    %vm164 = vmor %vm162, %vm163
    %v165 = vsel %vm164, %v156, %v161
    %v166 = vmul.f32 %v132, %v155
    %v167 = vmul.f32 %v133, %v165
    %v169 = vperm.slane %v114, 0
    %v171 = vmul.f32 %v166, %v169
    %v172 = vmul.f32 %v167, %v169
    %v174 = vperm.slane %v115, 0
    %v176 = vadd.f32 %v171, %v174
    %v177 = vadd.f32 %v172, %v174
    %v178 = vlaneseq
    %v179 = vshrl.u32 %v178, 7
    %v180 = vadd.s32 %v179, 8
    %v181 = vand.u32 %v179, 4294967288
    %v182 = vand.u32 %v180, 4294967288
    %v183 = vand.u32 %v60, 4294967288
    %vm184 = vcmp.eq.s32.totalorder %v181, %v183
    %vm185 = vcmp.eq.s32.totalorder %v182, %v183
    %v186 = vld [vmem:[%s4] sm:$0xff]
    %v187 = vld [vmem:[%s4 + $0x8] sm:$0xff]
    %v188 = vld [vmem:[%s4 + $0x10] sm:$0xff]
    %v189 = vld [vmem:[%s4 + $0x18] sm:$0xff]
    %v190 = vld [vmem:[%s5] sm:$0xff]
    %v191 = vld [vmem:[%s5 + $0x8] sm:$0xff]
    %v192 = vld [vmem:[%s5 + $0x10] sm:$0xff]
    %v193 = vld [vmem:[%s5 + $0x18] sm:$0xff]
    %v195 = vsel %vm116, %v176, 0
    %v198 = vsel %vm116, %v177, 0
    %200 = vmatpush.msra.mxu0 0.0
    %201 = vmatpush.msra.mxu0 0.0
    %202 = vmatpush.msra.mxu0 0.0
    %203 = vmatpush.msra.mxu0 0.0
    %204 = vmatpush.msra.mxu0 0.0
    %205 = vmatpush.msra.mxu0 0.0
    %206 = vmatpush.msra.mxu0 0.0
    %207 = vmatpush.msra.mxu0 0.0
    %208 = vmatpush.msra.mxu0 0.0
    %209 = vmatpush.msra.mxu0 0.0
    %210 = vmatpush.msra.mxu0 0.0
    %211 = vmatpush.msra.mxu0 0.0
    %212 = vmatpush.msra.mxu0 %v189
    %213 = vmatpush.msra.mxu0 %v188
    %214 = vmatpush.msra.mxu0 %v187
    %215 = vmatpush.msra.mxu0 %v186
    %216 = vmatmul.f32.gmra.mxu0 %v195
    %v217 = vpop.f32.mrf.mxu0
    %v218 = vadd.f32 0.0, %v217
    %219 = vmatmul.f32.gmra.mxu0 %v198
    %v220 = vpop.f32.mrf.mxu0
    %v221 = vadd.f32 0.0, %v220
    %222 = vdwg.mxu0
    %v223 = vmul.f32 %v218, 0.35355338
    %v224 = vmul.f32 %v221, 0.35355338
    %227 = vrot.lane.b32.xlu0 %v218, 96
    %v228 = vpop.permute.xlu0 %227
    %229 = vrot.lane.b32.xlu0 %v221, 96
    %v230 = vpop.permute.xlu0 %229
    %vm231 = vcmask 64512
    %v233 = vsel %vm231, %v223, 0
    %v236 = vsel %vm231, %v224, 0
    %v238 = vsel %vm231, %v228, 0
    %v240 = vsel %vm231, %v230, 0
    %242 = vmatpush.xpose.msra.mxu0 0.0
    %243 = vmatpush.xpose.msra.mxu0 0.0
    %244 = vmatpush.xpose.msra.mxu0 0.0
    %245 = vmatpush.xpose.msra.mxu0 0.0
    %246 = vmatpush.xpose.msra.mxu0 0.0
    %247 = vmatpush.xpose.msra.mxu0 0.0
    %248 = vmatpush.xpose.msra.mxu0 0.0
    %249 = vmatpush.xpose.msra.mxu0 0.0
    %250 = vmatpush.xpose.msra.mxu0 0.0
    %251 = vmatpush.xpose.msra.mxu0 0.0
    %252 = vmatpush.xpose.msra.mxu0 0.0
    %253 = vmatpush.xpose.msra.mxu0 0.0
    %254 = vmatpush.xpose.msra.mxu0 0.0
    %255 = vmatpush.xpose.msra.mxu0 0.0
    %256 = vmatpush.xpose.msra.mxu0 %v240
    %257 = vmatpush.xpose.msra.mxu0 %v238
    %258 = vmatmul.f32.gmra.mxu0 %v233
    %v259 = vpop.f32.mrf.mxu0
    %v260 = vadd.f32 0.0, %v259
    %261 = vmatmul.f32.gmra.mxu0 %v236
    %v262 = vpop.f32.mrf.mxu0
    %v263 = vadd.f32 0.0, %v262
    %264 = vdwg.mxu0
    %v265 = vsel %vm184, %v260, -1e+30
    %v266 = vsel %vm185, %v263, -1e+30
    %vm267 = vcmask 130048
    %v268 = vsel %vm267, %v265, -inf
    %269 = vmax.xlane.f32.xlu0 %v268
    %v270 = vpop.xlane.xlu0 %269
    %v271 = vsel %vm267, %v266, -inf
    %272 = vmax.xlane.f32.xlu0 %v271
    %v273 = vpop.xlane.xlu0 %272
    %v274 = vsub.f32 %v265, %v270
    %v275 = vsub.f32 %v266, %v273
    %v276 = vmul.f32 %v274, 1.442695
    %v277 = vpow.pop %v276
    %v278 = vmul.f32 %v275, 1.442695
    %v279 = vpow.pop %v278
    %v280 = vsel %vm267, %v277, 0.0
    %281 = vadd.xlane.f32.xlu0 %v280
    %v282 = vpop.xlane.xlu0 %281
    %v283 = vsel %vm267, %v279, 0.0
    %284 = vadd.xlane.f32.xlu0 %v283
    %v285 = vpop.xlane.xlu0 %284
    %v286 = vrcp.pop %v282
    %v287 = vrcp.pop %v285
    %v288 = vmul.f32 %v277, %v286
    %v289 = vmul.f32 %v279, %v287
    %290 = vrot.lane.b32.xlu0 %v218, 64
    %v291 = vpop.permute.xlu0 %290
    %292 = vrot.lane.b32.xlu0 %v221, 64
    %v293 = vpop.permute.xlu0 %292
    %v297 = vsel %vm267, %v288, 0
    %v300 = vsel %vm267, %v289, 0
    %302 = vmatpush.msra.mxu0 0.0
    %303 = vmatpush.msra.mxu0 0.0
    %304 = vmatpush.msra.mxu0 0.0
    %305 = vmatpush.msra.mxu0 0.0
    %306 = vmatpush.msra.mxu0 0.0
    %307 = vmatpush.msra.mxu0 0.0
    %308 = vmatpush.msra.mxu0 0.0
    %309 = vmatpush.msra.mxu0 0.0
    %310 = vmatpush.msra.mxu0 0.0
    %311 = vmatpush.msra.mxu0 0.0
    %312 = vmatpush.msra.mxu0 0.0
    %313 = vmatpush.msra.mxu0 0.0
    %314 = vmatpush.msra.mxu0 0.0
    %315 = vmatpush.msra.mxu0 0.0
    %316 = vmatpush.msra.mxu0 %v293
    %317 = vmatpush.msra.mxu0 %v291
    %318 = vmatmul.f32.gmra.mxu0 %v297
    %v319 = vpop.f32.mrf.mxu0
    %v320 = vadd.f32 0.0, %v319
    %321 = vmatmul.f32.gmra.mxu0 %v300
    %v322 = vpop.f32.mrf.mxu0
    %v323 = vadd.f32 0.0, %v322
    %324 = vdwg.mxu0
    %325 = vrot.lane.b32.xlu0 %v223, 120
    %v326 = vpop.permute.xlu0 %325
    %327 = vrot.lane.b32.xlu0 %v224, 120
    %v328 = vpop.permute.xlu0 %327
    %329 = vrot.lane.b32.xlu0 %v218, 88
    %v330 = vpop.permute.xlu0 %329
    %331 = vrot.lane.b32.xlu0 %v221, 88
    %v332 = vpop.permute.xlu0 %331
    %v333 = vsel %vm231, %v326, 0
    %v335 = vsel %vm231, %v328, 0
    %v337 = vsel %vm231, %v330, 0
    %v339 = vsel %vm231, %v332, 0
    %341 = vmatpush.xpose.msra.mxu0 0.0
    %342 = vmatpush.xpose.msra.mxu0 0.0
    %343 = vmatpush.xpose.msra.mxu0 0.0
    %344 = vmatpush.xpose.msra.mxu0 0.0
    %345 = vmatpush.xpose.msra.mxu0 0.0
    %346 = vmatpush.xpose.msra.mxu0 0.0
    %347 = vmatpush.xpose.msra.mxu0 0.0
    %348 = vmatpush.xpose.msra.mxu0 0.0
    %349 = vmatpush.xpose.msra.mxu0 0.0
    %350 = vmatpush.xpose.msra.mxu0 0.0
    %351 = vmatpush.xpose.msra.mxu0 0.0
    %352 = vmatpush.xpose.msra.mxu0 0.0
    %353 = vmatpush.xpose.msra.mxu0 0.0
    %354 = vmatpush.xpose.msra.mxu0 0.0
    %355 = vmatpush.xpose.msra.mxu0 %v339
    %356 = vmatpush.xpose.msra.mxu0 %v337
    %357 = vmatmul.f32.gmra.mxu0 %v333
    %v358 = vpop.f32.mrf.mxu0
    %v359 = vadd.f32 0.0, %v358
    %360 = vmatmul.f32.gmra.mxu0 %v335
    %v361 = vpop.f32.mrf.mxu0
    %v362 = vadd.f32 0.0, %v361
    %363 = vdwg.mxu0
    %v364 = vsel %vm184, %v359, -1e+30
    %v365 = vsel %vm185, %v362, -1e+30
    %v366 = vsel %vm267, %v364, -inf
    %367 = vmax.xlane.f32.xlu0 %v366
    %v368 = vpop.xlane.xlu0 %367
    %v369 = vsel %vm267, %v365, -inf
    %370 = vmax.xlane.f32.xlu0 %v369
    %v371 = vpop.xlane.xlu0 %370
    %v372 = vsub.f32 %v364, %v368
    %v373 = vsub.f32 %v365, %v371
    %v374 = vmul.f32 %v372, 1.442695
    %v375 = vpow.pop %v374
    %v376 = vmul.f32 %v373, 1.442695
    %v377 = vpow.pop %v376
    %v378 = vsel %vm267, %v375, 0.0
    %379 = vadd.xlane.f32.xlu0 %v378
    %v380 = vpop.xlane.xlu0 %379
    %v381 = vsel %vm267, %v377, 0.0
    %382 = vadd.xlane.f32.xlu0 %v381
    %v383 = vpop.xlane.xlu0 %382
    %v384 = vrcp.pop %v380
    %v385 = vrcp.pop %v383
    %v386 = vmul.f32 %v375, %v384
    %v387 = vmul.f32 %v377, %v385
    %388 = vrot.lane.b32.xlu0 %v218, 56
    %v389 = vpop.permute.xlu0 %388
    %390 = vrot.lane.b32.xlu0 %v221, 56
    %v391 = vpop.permute.xlu0 %390
    %v395 = vsel %vm267, %v386, 0
    %v398 = vsel %vm267, %v387, 0
    %400 = vmatpush.msra.mxu0 0.0
    %401 = vmatpush.msra.mxu0 0.0
    %402 = vmatpush.msra.mxu0 0.0
    %403 = vmatpush.msra.mxu0 0.0
    %404 = vmatpush.msra.mxu0 0.0
    %405 = vmatpush.msra.mxu0 0.0
    %406 = vmatpush.msra.mxu0 0.0
    %407 = vmatpush.msra.mxu0 0.0
    %408 = vmatpush.msra.mxu0 0.0
    %409 = vmatpush.msra.mxu0 0.0
    %410 = vmatpush.msra.mxu0 0.0
    %411 = vmatpush.msra.mxu0 0.0
    %412 = vmatpush.msra.mxu0 0.0
    %413 = vmatpush.msra.mxu0 0.0
    %414 = vmatpush.msra.mxu0 %v391
    %415 = vmatpush.msra.mxu0 %v389
    %416 = vmatmul.f32.gmra.mxu0 %v395
    %v417 = vpop.f32.mrf.mxu0
    %v418 = vadd.f32 0.0, %v417
    %419 = vmatmul.f32.gmra.mxu0 %v398
    %v420 = vpop.f32.mrf.mxu0
    %v421 = vadd.f32 0.0, %v420
    %422 = vdwg.mxu0
    %v424 = vsel %vm231, %v418, 0
    %v427 = vsel %vm231, %v421, 0
    %429 = vmatpush.msra.mxu0 0.0
    %430 = vmatpush.msra.mxu0 0.0
    %431 = vmatpush.msra.mxu0 0.0
    %432 = vmatpush.msra.mxu0 0.0
    %433 = vmatpush.msra.mxu0 0.0
    %434 = vmatpush.msra.mxu0 0.0
    %435 = vmatpush.msra.mxu0 0.0
    %436 = vmatpush.msra.mxu0 0.0
    %437 = vmatpush.msra.mxu0 0.0
    %438 = vmatpush.msra.mxu0 0.0
    %439 = vmatpush.msra.mxu0 0.0
    %440 = vmatpush.msra.mxu0 0.0
    %441 = vmatpush.msra.mxu0 0.0
    %442 = vmatpush.msra.mxu0 0.0
    %443 = vmatpush.msra.mxu0 0.0
    %444 = vmatpush.msra.mxu0 %v191
    %445 = vmatmul.f32.gmra.mxu0 %v424
    %v446 = vpop.f32.mrf.mxu0
    %v447 = vadd.f32 0.0, %v446
    %448 = vmatmul.f32.gmra.mxu0 %v427
    %v449 = vpop.f32.mrf.mxu0
    %v450 = vadd.f32 0.0, %v449
    %451 = vdwg.mxu0
    %v453 = vsel %vm231, %v320, 0
    %v456 = vsel %vm231, %v323, 0
    %458 = vmatpush.msra.mxu0 0.0
    %459 = vmatpush.msra.mxu0 0.0
    %460 = vmatpush.msra.mxu0 0.0
    %461 = vmatpush.msra.mxu0 0.0
    %462 = vmatpush.msra.mxu0 0.0
    %463 = vmatpush.msra.mxu0 0.0
    %464 = vmatpush.msra.mxu0 0.0
    %465 = vmatpush.msra.mxu0 0.0
    %466 = vmatpush.msra.mxu0 0.0
    %467 = vmatpush.msra.mxu0 0.0
    %468 = vmatpush.msra.mxu0 0.0
    %469 = vmatpush.msra.mxu0 0.0
    %470 = vmatpush.msra.mxu0 0.0
    %471 = vmatpush.msra.mxu0 0.0
    %472 = vmatpush.msra.mxu0 0.0
    %473 = vmatpush.msra.mxu0 %v190
    %474 = vmatmul.f32.gmra.mxu0 %v453
    %v475 = vpop.f32.mrf.mxu0
    %v476 = vadd.f32 %v447, %v475
    %477 = vmatmul.f32.gmra.mxu0 %v456
    %v478 = vpop.f32.mrf.mxu0
    %v479 = vadd.f32 %v450, %v478
    %480 = vdwg.mxu0
    %481 = vrot.lane.b32.xlu0 %v223, 112
    %v482 = vpop.permute.xlu0 %481
    %483 = vrot.lane.b32.xlu0 %v224, 112
    %v484 = vpop.permute.xlu0 %483
    %485 = vrot.lane.b32.xlu0 %v218, 80
    %v486 = vpop.permute.xlu0 %485
    %487 = vrot.lane.b32.xlu0 %v221, 80
    %v488 = vpop.permute.xlu0 %487
    %v489 = vsel %vm231, %v482, 0
    %v491 = vsel %vm231, %v484, 0
    %v493 = vsel %vm231, %v486, 0
    %v495 = vsel %vm231, %v488, 0
    %497 = vmatpush.xpose.msra.mxu0 0.0
    %498 = vmatpush.xpose.msra.mxu0 0.0
    %499 = vmatpush.xpose.msra.mxu0 0.0
    %500 = vmatpush.xpose.msra.mxu0 0.0
    %501 = vmatpush.xpose.msra.mxu0 0.0
    %502 = vmatpush.xpose.msra.mxu0 0.0
    %503 = vmatpush.xpose.msra.mxu0 0.0
    %504 = vmatpush.xpose.msra.mxu0 0.0
    %505 = vmatpush.xpose.msra.mxu0 0.0
    %506 = vmatpush.xpose.msra.mxu0 0.0
    %507 = vmatpush.xpose.msra.mxu0 0.0
    %508 = vmatpush.xpose.msra.mxu0 0.0
    %509 = vmatpush.xpose.msra.mxu0 0.0
    %510 = vmatpush.xpose.msra.mxu0 0.0
    %511 = vmatpush.xpose.msra.mxu0 %v495
    %512 = vmatpush.xpose.msra.mxu0 %v493
    %513 = vmatmul.f32.gmra.mxu0 %v489
    %v514 = vpop.f32.mrf.mxu0
    %v515 = vadd.f32 0.0, %v514
    %516 = vmatmul.f32.gmra.mxu0 %v491
    %v517 = vpop.f32.mrf.mxu0
    %v518 = vadd.f32 0.0, %v517
    %519 = vdwg.mxu0
    %v520 = vsel %vm184, %v515, -1e+30
    %v521 = vsel %vm185, %v518, -1e+30
    %v522 = vsel %vm267, %v520, -inf
    %523 = vmax.xlane.f32.xlu0 %v522
    %v524 = vpop.xlane.xlu0 %523
    %v525 = vsel %vm267, %v521, -inf
    %526 = vmax.xlane.f32.xlu0 %v525
    %v527 = vpop.xlane.xlu0 %526
    %v528 = vsub.f32 %v520, %v524
    %v529 = vsub.f32 %v521, %v527
    %v530 = vmul.f32 %v528, 1.442695
    %v531 = vpow.pop %v530
    %v532 = vmul.f32 %v529, 1.442695
    %v533 = vpow.pop %v532
    %v534 = vsel %vm267, %v531, 0.0
    %535 = vadd.xlane.f32.xlu0 %v534
    %v536 = vpop.xlane.xlu0 %535
    %v537 = vsel %vm267, %v533, 0.0
    %538 = vadd.xlane.f32.xlu0 %v537
    %v539 = vpop.xlane.xlu0 %538
    %v540 = vrcp.pop %v536
    %v541 = vrcp.pop %v539
    %v542 = vmul.f32 %v531, %v540
    %v543 = vmul.f32 %v533, %v541
    %544 = vrot.lane.b32.xlu0 %v218, 48
    %v545 = vpop.permute.xlu0 %544
    %546 = vrot.lane.b32.xlu0 %v221, 48
    %v547 = vpop.permute.xlu0 %546
    %v551 = vsel %vm267, %v542, 0
    %v554 = vsel %vm267, %v543, 0
    %556 = vmatpush.msra.mxu0 0.0
    %557 = vmatpush.msra.mxu0 0.0
    %558 = vmatpush.msra.mxu0 0.0
    %559 = vmatpush.msra.mxu0 0.0
    %560 = vmatpush.msra.mxu0 0.0
    %561 = vmatpush.msra.mxu0 0.0
    %562 = vmatpush.msra.mxu0 0.0
    %563 = vmatpush.msra.mxu0 0.0
    %564 = vmatpush.msra.mxu0 0.0
    %565 = vmatpush.msra.mxu0 0.0
    %566 = vmatpush.msra.mxu0 0.0
    %567 = vmatpush.msra.mxu0 0.0
    %568 = vmatpush.msra.mxu0 0.0
    %569 = vmatpush.msra.mxu0 0.0
    %570 = vmatpush.msra.mxu0 %v547
    %571 = vmatpush.msra.mxu0 %v545
    %572 = vmatmul.f32.gmra.mxu0 %v551
    %v573 = vpop.f32.mrf.mxu0
    %v574 = vadd.f32 0.0, %v573
    %575 = vmatmul.f32.gmra.mxu0 %v554
    %v576 = vpop.f32.mrf.mxu0
    %v577 = vadd.f32 0.0, %v576
    %578 = vdwg.mxu0
    %v580 = vsel %vm231, %v574, 0
    %v583 = vsel %vm231, %v577, 0
    %585 = vmatpush.msra.mxu0 0.0
    %586 = vmatpush.msra.mxu0 0.0
    %587 = vmatpush.msra.mxu0 0.0
    %588 = vmatpush.msra.mxu0 0.0
    %589 = vmatpush.msra.mxu0 0.0
    %590 = vmatpush.msra.mxu0 0.0
    %591 = vmatpush.msra.mxu0 0.0
    %592 = vmatpush.msra.mxu0 0.0
    %593 = vmatpush.msra.mxu0 0.0
    %594 = vmatpush.msra.mxu0 0.0
    %595 = vmatpush.msra.mxu0 0.0
    %596 = vmatpush.msra.mxu0 0.0
    %597 = vmatpush.msra.mxu0 0.0
    %598 = vmatpush.msra.mxu0 0.0
    %599 = vmatpush.msra.mxu0 0.0
    %600 = vmatpush.msra.mxu0 %v192
    %601 = vmatmul.f32.gmra.mxu0 %v580
    %v602 = vpop.f32.mrf.mxu0
    %v603 = vadd.f32 0.0, %v602
    %604 = vmatmul.f32.gmra.mxu0 %v583
    %v605 = vpop.f32.mrf.mxu0
    %v606 = vadd.f32 0.0, %v605
    %607 = vdwg.mxu0
    %v608 = vadd.f32 %v476, %v603
    %v609 = vadd.f32 %v479, %v606
    %610 = vrot.lane.b32.xlu0 %v223, 104
    %v611 = vpop.permute.xlu0 %610
    %612 = vrot.lane.b32.xlu0 %v224, 104
    %v613 = vpop.permute.xlu0 %612
    %614 = vrot.lane.b32.xlu0 %v218, 72
    %v615 = vpop.permute.xlu0 %614
    %616 = vrot.lane.b32.xlu0 %v221, 72
    %v617 = vpop.permute.xlu0 %616
    %v618 = vsel %vm231, %v611, 0
    %v620 = vsel %vm231, %v613, 0
    %v622 = vsel %vm231, %v615, 0
    %v624 = vsel %vm231, %v617, 0
    %626 = vmatpush.xpose.msra.mxu0 0.0
    %627 = vmatpush.xpose.msra.mxu0 0.0
    %628 = vmatpush.xpose.msra.mxu0 0.0
    %629 = vmatpush.xpose.msra.mxu0 0.0
    %630 = vmatpush.xpose.msra.mxu0 0.0
    %631 = vmatpush.xpose.msra.mxu0 0.0
    %632 = vmatpush.xpose.msra.mxu0 0.0
    %633 = vmatpush.xpose.msra.mxu0 0.0
    %634 = vmatpush.xpose.msra.mxu0 0.0
    %635 = vmatpush.xpose.msra.mxu0 0.0
    %636 = vmatpush.xpose.msra.mxu0 0.0
    %637 = vmatpush.xpose.msra.mxu0 0.0
    %638 = vmatpush.xpose.msra.mxu0 0.0
    %639 = vmatpush.xpose.msra.mxu0 0.0
    %640 = vmatpush.xpose.msra.mxu0 %v624
    %641 = vmatpush.xpose.msra.mxu0 %v622
    %642 = vmatmul.f32.gmra.mxu0 %v618
    %v643 = vpop.f32.mrf.mxu0
    %v644 = vadd.f32 0.0, %v643
    %645 = vmatmul.f32.gmra.mxu0 %v620
    %v646 = vpop.f32.mrf.mxu0
    %v647 = vadd.f32 0.0, %v646
    %648 = vdwg.mxu0
    %v649 = vsel %vm184, %v644, -1e+30
    %v650 = vsel %vm185, %v647, -1e+30
    %v651 = vsel %vm267, %v649, -inf
    %652 = vmax.xlane.f32.xlu0 %v651
    %v653 = vpop.xlane.xlu0 %652
    %v654 = vsel %vm267, %v650, -inf
    %655 = vmax.xlane.f32.xlu0 %v654
    %v656 = vpop.xlane.xlu0 %655
    %v657 = vsub.f32 %v649, %v653
    %v658 = vsub.f32 %v650, %v656
    %v659 = vmul.f32 %v657, 1.442695
    %v660 = vpow.pop %v659
    %v661 = vmul.f32 %v658, 1.442695
    %v662 = vpow.pop %v661
    %v663 = vsel %vm267, %v660, 0.0
    %664 = vadd.xlane.f32.xlu0 %v663
    %v665 = vpop.xlane.xlu0 %664
    %v666 = vsel %vm267, %v662, 0.0
    %667 = vadd.xlane.f32.xlu0 %v666
    %v668 = vpop.xlane.xlu0 %667
    %v669 = vrcp.pop %v665
    %v670 = vrcp.pop %v668
    %v671 = vmul.f32 %v660, %v669
    %v672 = vmul.f32 %v662, %v670
    %673 = vrot.lane.b32.xlu0 %v218, 40
    %v674 = vpop.permute.xlu0 %673
    %675 = vrot.lane.b32.xlu0 %v221, 40
    %v676 = vpop.permute.xlu0 %675
    %v680 = vsel %vm267, %v671, 0
    %v683 = vsel %vm267, %v672, 0
    %685 = vmatpush.msra.mxu0 0.0
    %686 = vmatpush.msra.mxu0 0.0
    %687 = vmatpush.msra.mxu0 0.0
    %688 = vmatpush.msra.mxu0 0.0
    %689 = vmatpush.msra.mxu0 0.0
    %690 = vmatpush.msra.mxu0 0.0
    %691 = vmatpush.msra.mxu0 0.0
    %692 = vmatpush.msra.mxu0 0.0
    %693 = vmatpush.msra.mxu0 0.0
    %694 = vmatpush.msra.mxu0 0.0
    %695 = vmatpush.msra.mxu0 0.0
    %696 = vmatpush.msra.mxu0 0.0
    %697 = vmatpush.msra.mxu0 0.0
    %698 = vmatpush.msra.mxu0 0.0
    %699 = vmatpush.msra.mxu0 %v676
    %700 = vmatpush.msra.mxu0 %v674
    %701 = vmatmul.f32.gmra.mxu0 %v680
    %v702 = vpop.f32.mrf.mxu0
    %v703 = vadd.f32 0.0, %v702
    %704 = vmatmul.f32.gmra.mxu0 %v683
    %v705 = vpop.f32.mrf.mxu0
    %v706 = vadd.f32 0.0, %v705
    %707 = vdwg.mxu0
    %v709 = vsel %vm231, %v703, 0
    %v712 = vsel %vm231, %v706, 0
    %714 = vmatpush.msra.mxu0 0.0
    %715 = vmatpush.msra.mxu0 0.0
    %716 = vmatpush.msra.mxu0 0.0
    %717 = vmatpush.msra.mxu0 0.0
    %718 = vmatpush.msra.mxu0 0.0
    %719 = vmatpush.msra.mxu0 0.0
    %720 = vmatpush.msra.mxu0 0.0
    %721 = vmatpush.msra.mxu0 0.0
    %722 = vmatpush.msra.mxu0 0.0
    %723 = vmatpush.msra.mxu0 0.0
    %724 = vmatpush.msra.mxu0 0.0
    %725 = vmatpush.msra.mxu0 0.0
    %726 = vmatpush.msra.mxu0 0.0
    %727 = vmatpush.msra.mxu0 0.0
    %728 = vmatpush.msra.mxu0 0.0
    %729 = vmatpush.msra.mxu0 %v193
    %730 = vmatmul.f32.gmra.mxu0 %v709
    %v731 = vpop.f32.mrf.mxu0
    %v732 = vadd.f32 0.0, %v731
    %733 = vmatmul.f32.gmra.mxu0 %v712
    %v734 = vpop.f32.mrf.mxu0
    %v735 = vadd.f32 0.0, %v734
    %736 = vdwg.mxu0
    %v737 = vadd.f32 %v608, %v732
    %v738 = vadd.f32 %v609, %v735
    %v739 = vld [vmem:[%s6] sm:$0x1]
    %v741 = vperm.slane %v739, 0
    %v743 = vadd.f32 %v737, %v741
    %v744 = vadd.f32 %v738, %v741
    %v745 = vadd.f32 %v176, %v743
    %v746 = vadd.f32 %v177, %v744
    %v747 = vld [vmem:[%s7] sm:$0x1]
    %v748 = vld [vmem:[%s8] sm:$0x1]
    %v749 = vsel %vm116, %v745, 0.0
    %750 = vadd.xlane.f32.xlu0 %v749
    %v751 = vpop.xlane.xlu0 %750
    %v752 = vsel %vm116, %v746, 0.0
    %753 = vadd.xlane.f32.xlu0 %v752
    %v754 = vpop.xlane.xlu0 %753
    %v755 = vmul.f32 %v751, %v129
    %v756 = vmul.f32 %v754, %v129
    %v757 = vsub.f32 %v745, %v755
    %v758 = vsub.f32 %v746, %v756
    %v759 = vmul.f32 %v757, %v757
    %v760 = vmul.f32 %v758, %v758
    %v761 = vsel %vm116, %v759, 0.0
    %762 = vadd.xlane.f32.xlu0 %v761
    %v763 = vpop.xlane.xlu0 %762
    %v764 = vsel %vm116, %v760, 0.0
    %765 = vadd.xlane.f32.xlu0 %v764
    %v766 = vpop.xlane.xlu0 %765
    %v767 = vmul.f32 %v763, %v129
    %v768 = vmul.f32 %v766, %v129
    %v769 = vadd.f32 %v767, 1e-06
    %v770 = vadd.f32 %v768, 1e-06
    %v771 = vrsqrt.pop %v769
    %v772 = vmul.f32 %v771, %v769
    %v773 = vmul.f32 %v772, %v771
    %v774 = vmul.f32 0.5, %v773
    %v775 = vsub.f32 1.5, %v774
    %v776 = vmul.f32 %v771, %v775
    %vm777 = vweird.f32 %v769
    %vm778 = vweird.f32 %v771
    %vm779 = vmor %vm777, %vm778
    %v780 = vsel %vm779, %v771, %v776
    %v781 = vrsqrt.pop %v770
    %v782 = vmul.f32 %v781, %v770
    %v783 = vmul.f32 %v782, %v781
    %v784 = vmul.f32 0.5, %v783
    %v785 = vsub.f32 1.5, %v784
    %v786 = vmul.f32 %v781, %v785
    %vm787 = vweird.f32 %v770
    %vm788 = vweird.f32 %v781
    %vm789 = vmor %vm787, %vm788
    %v790 = vsel %vm789, %v781, %v786
    %v791 = vmul.f32 %v757, %v780
    %v792 = vmul.f32 %v758, %v790
    %v794 = vperm.slane %v747, 0
    %v796 = vmul.f32 %v791, %v794
    %v797 = vmul.f32 %v792, %v794
    %v799 = vperm.slane %v748, 0
    %v801 = vadd.f32 %v796, %v799
    %v802 = vadd.f32 %v797, %v799
    %v803 = vld [vmem:[%s9] sm:$0xff]
    %v804 = vld [vmem:[%s9 + $0x8] sm:$0xff]
    %v805 = vld [vmem:[%s9 + $0x10] sm:$0xff]
    %v806 = vld [vmem:[%s9 + $0x18] sm:$0xff]
    %v807 = vld [vmem:[%s10] sm:$0x1]
    %v809 = vperm.slane %v807, 0
    %v812 = vsel %vm116, %v801, 0
    %v815 = vsel %vm116, %v802, 0
    %817 = vmatpush.msra.mxu0 0.0
    %818 = vmatpush.msra.mxu0 0.0
    %819 = vmatpush.msra.mxu0 0.0
    %820 = vmatpush.msra.mxu0 0.0
    %821 = vmatpush.msra.mxu0 0.0
    %822 = vmatpush.msra.mxu0 0.0
    %823 = vmatpush.msra.mxu0 0.0
    %824 = vmatpush.msra.mxu0 0.0
    %825 = vmatpush.msra.mxu0 0.0
    %826 = vmatpush.msra.mxu0 0.0
    %827 = vmatpush.msra.mxu0 0.0
    %828 = vmatpush.msra.mxu0 0.0
    %829 = vmatpush.msra.mxu0 %v806
    %830 = vmatpush.msra.mxu0 %v805
    %831 = vmatpush.msra.mxu0 %v804
    %832 = vmatpush.msra.mxu0 %v803
    %833 = vmatmul.f32.gmra.mxu0 %v812
    %v834 = vpop.f32.mrf.mxu0
    %v835 = vadd.f32 %v809, %v834
    %836 = vmatmul.f32.gmra.mxu0 %v815
    %v837 = vpop.f32.mrf.mxu0
    %v838 = vadd.f32 %v809, %v837
    %839 = vdwg.mxu0
    %v840 = vmax.f32 %v835, 0.0
    %v841 = vmax.f32 %v838, 0.0
    %v842 = vld [vmem:[%s11] sm:$0xff]
    %v843 = vld [vmem:[%s11 + $0x8] sm:$0xff]
    %v844 = vld [vmem:[%s11 + $0x10] sm:$0xff]
    %v845 = vld [vmem:[%s11 + $0x18] sm:$0xff]
    %v846 = vld [vmem:[%s11 + $0x20] sm:$0xff]
    %v847 = vld [vmem:[%s11 + $0x28] sm:$0xff]
    %v848 = vld [vmem:[%s11 + $0x30] sm:$0xff]
    %v849 = vld [vmem:[%s11 + $0x38] sm:$0xff]
    %v850 = vld [vmem:[%s12] sm:$0x1]
    %v852 = vperm.slane %v850, 0
    %vm854 = vcmask 523264
    %v856 = vsel %vm854, %v840, 0
    %v859 = vsel %vm854, %v841, 0
    %861 = vmatpush.msra.mxu0 0.0
    %862 = vmatpush.msra.mxu0 0.0
    %863 = vmatpush.msra.mxu0 0.0
    %864 = vmatpush.msra.mxu0 0.0
    %865 = vmatpush.msra.mxu0 0.0
    %866 = vmatpush.msra.mxu0 0.0
    %867 = vmatpush.msra.mxu0 0.0
    %868 = vmatpush.msra.mxu0 0.0
    %869 = vmatpush.msra.mxu0 %v849
    %870 = vmatpush.msra.mxu0 %v848
    %871 = vmatpush.msra.mxu0 %v847
    %872 = vmatpush.msra.mxu0 %v846
    %873 = vmatpush.msra.mxu0 %v845
    %874 = vmatpush.msra.mxu0 %v844
    %875 = vmatpush.msra.mxu0 %v843
    %876 = vmatpush.msra.mxu0 %v842
    %877 = vmatmul.f32.gmra.mxu0 %v856
    %v878 = vpop.f32.mrf.mxu0
    %v879 = vadd.f32 %v852, %v878
    %880 = vmatmul.f32.gmra.mxu0 %v859
    %v881 = vpop.f32.mrf.mxu0
    %v882 = vadd.f32 %v852, %v881
    %883 = vdwg.mxu0
    %v884 = vadd.f32 %v801, %v879
    %v885 = vadd.f32 %v802, %v882
    %v886 = vld [vmem:[%s13] sm:$0x1]
    %v887 = vld [vmem:[%s14] sm:$0x1]
    %v888 = vsel %vm116, %v884, 0.0
    %889 = vadd.xlane.f32.xlu0 %v888
    %v890 = vpop.xlane.xlu0 %889
    %v891 = vsel %vm116, %v885, 0.0
    %892 = vadd.xlane.f32.xlu0 %v891
    %v893 = vpop.xlane.xlu0 %892
    %v894 = vmul.f32 %v890, %v129
    %v895 = vmul.f32 %v893, %v129
    %v896 = vsub.f32 %v884, %v894
    %v897 = vsub.f32 %v885, %v895
    %v898 = vmul.f32 %v896, %v896
    %v899 = vmul.f32 %v897, %v897
    %v900 = vsel %vm116, %v898, 0.0
    %901 = vadd.xlane.f32.xlu0 %v900
    %v902 = vpop.xlane.xlu0 %901
    %v903 = vsel %vm116, %v899, 0.0
    %904 = vadd.xlane.f32.xlu0 %v903
    %v905 = vpop.xlane.xlu0 %904
    %v906 = vmul.f32 %v902, %v129
    %v907 = vmul.f32 %v905, %v129
    %v908 = vadd.f32 %v906, 1e-06
    %v909 = vadd.f32 %v907, 1e-06
    %v910 = vrsqrt.pop %v908
    %v911 = vmul.f32 %v910, %v908
    %v912 = vmul.f32 %v911, %v910
    %v913 = vmul.f32 0.5, %v912
    %v914 = vsub.f32 1.5, %v913
    %v915 = vmul.f32 %v910, %v914
    %vm916 = vweird.f32 %v908
    %vm917 = vweird.f32 %v910
    %vm918 = vmor %vm916, %vm917
    %v919 = vsel %vm918, %v910, %v915
    %v920 = vrsqrt.pop %v909
    %v921 = vmul.f32 %v920, %v909
    %v922 = vmul.f32 %v921, %v920
    %v923 = vmul.f32 0.5, %v922
    %v924 = vsub.f32 1.5, %v923
    %v925 = vmul.f32 %v920, %v924
    %vm926 = vweird.f32 %v909
    %vm927 = vweird.f32 %v920
    %vm928 = vmor %vm926, %vm927
    %v929 = vsel %vm928, %v920, %v925
    %v930 = vmul.f32 %v896, %v919
    %v931 = vmul.f32 %v897, %v929
    %v933 = vperm.slane %v886, 0
    %v935 = vmul.f32 %v930, %v933
    %v936 = vmul.f32 %v931, %v933
    %v938 = vperm.slane %v887, 0
    %v940 = vadd.f32 %v935, %v938
    %v941 = vadd.f32 %v936, %v938
    %s942 = scalar_lea.vmem %s4, 32
    %v943 = vld [vmem:[%s942] sm:$0xff]
    %v944 = vld [vmem:[%s942 + $0x8] sm:$0xff]
    %v945 = vld [vmem:[%s942 + $0x10] sm:$0xff]
    %v946 = vld [vmem:[%s942 + $0x18] sm:$0xff]
    %s947 = scalar_lea.vmem %s5, 32
    %v948 = vld [vmem:[%s947] sm:$0xff]
    %v949 = vld [vmem:[%s947 + $0x8] sm:$0xff]
    %v950 = vld [vmem:[%s947 + $0x10] sm:$0xff]
    %v951 = vld [vmem:[%s947 + $0x18] sm:$0xff]
    %v953 = vsel %vm116, %v940, 0
    %v956 = vsel %vm116, %v941, 0
    %958 = vmatpush.msra.mxu0 0.0
    %959 = vmatpush.msra.mxu0 0.0
    %960 = vmatpush.msra.mxu0 0.0
    %961 = vmatpush.msra.mxu0 0.0
    %962 = vmatpush.msra.mxu0 0.0
    %963 = vmatpush.msra.mxu0 0.0
    %964 = vmatpush.msra.mxu0 0.0
    %965 = vmatpush.msra.mxu0 0.0
    %966 = vmatpush.msra.mxu0 0.0
    %967 = vmatpush.msra.mxu0 0.0
    %968 = vmatpush.msra.mxu0 0.0
    %969 = vmatpush.msra.mxu0 0.0
    %970 = vmatpush.msra.mxu0 %v946
    %971 = vmatpush.msra.mxu0 %v945
    %972 = vmatpush.msra.mxu0 %v944
    %973 = vmatpush.msra.mxu0 %v943
    %974 = vmatmul.f32.gmra.mxu0 %v953
    %v975 = vpop.f32.mrf.mxu0
    %v976 = vadd.f32 0.0, %v975
    %977 = vmatmul.f32.gmra.mxu0 %v956
    %v978 = vpop.f32.mrf.mxu0
    %v979 = vadd.f32 0.0, %v978
    %980 = vdwg.mxu0
    %v981 = vmul.f32 %v976, 0.35355338
    %v982 = vmul.f32 %v979, 0.35355338
    %985 = vrot.lane.b32.xlu0 %v976, 96
    %v986 = vpop.permute.xlu0 %985
    %987 = vrot.lane.b32.xlu0 %v979, 96
    %v988 = vpop.permute.xlu0 %987
    %v990 = vsel %vm231, %v981, 0
    %v993 = vsel %vm231, %v982, 0
    %v995 = vsel %vm231, %v986, 0
    %v997 = vsel %vm231, %v988, 0
    %999 = vmatpush.xpose.msra.mxu0 0.0
    %1000 = vmatpush.xpose.msra.mxu0 0.0
    %1001 = vmatpush.xpose.msra.mxu0 0.0
    %1002 = vmatpush.xpose.msra.mxu0 0.0
    %1003 = vmatpush.xpose.msra.mxu0 0.0
    %1004 = vmatpush.xpose.msra.mxu0 0.0
    %1005 = vmatpush.xpose.msra.mxu0 0.0
    %1006 = vmatpush.xpose.msra.mxu0 0.0
    %1007 = vmatpush.xpose.msra.mxu0 0.0
    %1008 = vmatpush.xpose.msra.mxu0 0.0
    %1009 = vmatpush.xpose.msra.mxu0 0.0
    %1010 = vmatpush.xpose.msra.mxu0 0.0
    %1011 = vmatpush.xpose.msra.mxu0 0.0
    %1012 = vmatpush.xpose.msra.mxu0 0.0
    %1013 = vmatpush.xpose.msra.mxu0 %v997
    %1014 = vmatpush.xpose.msra.mxu0 %v995
    %1015 = vmatmul.f32.gmra.mxu0 %v990
    %v1016 = vpop.f32.mrf.mxu0
    %v1017 = vadd.f32 0.0, %v1016
    %1018 = vmatmul.f32.gmra.mxu0 %v993
    %v1019 = vpop.f32.mrf.mxu0
    %v1020 = vadd.f32 0.0, %v1019
    %1021 = vdwg.mxu0
    %v1022 = vsel %vm184, %v1017, -1e+30
    %v1023 = vsel %vm185, %v1020, -1e+30
    %v1024 = vsel %vm267, %v1022, -inf
    %1025 = vmax.xlane.f32.xlu0 %v1024
    %v1026 = vpop.xlane.xlu0 %1025
    %v1027 = vsel %vm267, %v1023, -inf
    %1028 = vmax.xlane.f32.xlu0 %v1027
    %v1029 = vpop.xlane.xlu0 %1028
    %v1030 = vsub.f32 %v1022, %v1026
    %v1031 = vsub.f32 %v1023, %v1029
    %v1032 = vmul.f32 %v1030, 1.442695
    %v1033 = vpow.pop %v1032
    %v1034 = vmul.f32 %v1031, 1.442695
    %v1035 = vpow.pop %v1034
    %v1036 = vsel %vm267, %v1033, 0.0
    %1037 = vadd.xlane.f32.xlu0 %v1036
    %v1038 = vpop.xlane.xlu0 %1037
    %v1039 = vsel %vm267, %v1035, 0.0
    %1040 = vadd.xlane.f32.xlu0 %v1039
    %v1041 = vpop.xlane.xlu0 %1040
    %v1042 = vrcp.pop %v1038
    %v1043 = vrcp.pop %v1041
    %v1044 = vmul.f32 %v1033, %v1042
    %v1045 = vmul.f32 %v1035, %v1043
    %1046 = vrot.lane.b32.xlu0 %v976, 64
    %v1047 = vpop.permute.xlu0 %1046
    %1048 = vrot.lane.b32.xlu0 %v979, 64
    %v1049 = vpop.permute.xlu0 %1048
    %v1053 = vsel %vm267, %v1044, 0
    %v1056 = vsel %vm267, %v1045, 0
    %1058 = vmatpush.msra.mxu0 0.0
    %1059 = vmatpush.msra.mxu0 0.0
    %1060 = vmatpush.msra.mxu0 0.0
    %1061 = vmatpush.msra.mxu0 0.0
    %1062 = vmatpush.msra.mxu0 0.0
    %1063 = vmatpush.msra.mxu0 0.0
    %1064 = vmatpush.msra.mxu0 0.0
    %1065 = vmatpush.msra.mxu0 0.0
    %1066 = vmatpush.msra.mxu0 0.0
    %1067 = vmatpush.msra.mxu0 0.0
    %1068 = vmatpush.msra.mxu0 0.0
    %1069 = vmatpush.msra.mxu0 0.0
    %1070 = vmatpush.msra.mxu0 0.0
    %1071 = vmatpush.msra.mxu0 0.0
    %1072 = vmatpush.msra.mxu0 %v1049
    %1073 = vmatpush.msra.mxu0 %v1047
    %1074 = vmatmul.f32.gmra.mxu0 %v1053
    %v1075 = vpop.f32.mrf.mxu0
    %v1076 = vadd.f32 0.0, %v1075
    %1077 = vmatmul.f32.gmra.mxu0 %v1056
    %v1078 = vpop.f32.mrf.mxu0
    %v1079 = vadd.f32 0.0, %v1078
    %1080 = vdwg.mxu0
    %1081 = vrot.lane.b32.xlu0 %v981, 120
    %v1082 = vpop.permute.xlu0 %1081
    %1083 = vrot.lane.b32.xlu0 %v982, 120
    %v1084 = vpop.permute.xlu0 %1083
    %1085 = vrot.lane.b32.xlu0 %v976, 88
    %v1086 = vpop.permute.xlu0 %1085
    %1087 = vrot.lane.b32.xlu0 %v979, 88
    %v1088 = vpop.permute.xlu0 %1087
    %v1089 = vsel %vm231, %v1082, 0
    %v1091 = vsel %vm231, %v1084, 0
    %v1093 = vsel %vm231, %v1086, 0
    %v1095 = vsel %vm231, %v1088, 0
    %1097 = vmatpush.xpose.msra.mxu0 0.0
    %1098 = vmatpush.xpose.msra.mxu0 0.0
    %1099 = vmatpush.xpose.msra.mxu0 0.0
    %1100 = vmatpush.xpose.msra.mxu0 0.0
    %1101 = vmatpush.xpose.msra.mxu0 0.0
    %1102 = vmatpush.xpose.msra.mxu0 0.0
    %1103 = vmatpush.xpose.msra.mxu0 0.0
    %1104 = vmatpush.xpose.msra.mxu0 0.0
    %1105 = vmatpush.xpose.msra.mxu0 0.0
    %1106 = vmatpush.xpose.msra.mxu0 0.0
    %1107 = vmatpush.xpose.msra.mxu0 0.0
    %1108 = vmatpush.xpose.msra.mxu0 0.0
    %1109 = vmatpush.xpose.msra.mxu0 0.0
    %1110 = vmatpush.xpose.msra.mxu0 0.0
    %1111 = vmatpush.xpose.msra.mxu0 %v1095
    %1112 = vmatpush.xpose.msra.mxu0 %v1093
    %1113 = vmatmul.f32.gmra.mxu0 %v1089
    %v1114 = vpop.f32.mrf.mxu0
    %v1115 = vadd.f32 0.0, %v1114
    %1116 = vmatmul.f32.gmra.mxu0 %v1091
    %v1117 = vpop.f32.mrf.mxu0
    %v1118 = vadd.f32 0.0, %v1117
    %1119 = vdwg.mxu0
    %v1120 = vsel %vm184, %v1115, -1e+30
    %v1121 = vsel %vm185, %v1118, -1e+30
    %v1122 = vsel %vm267, %v1120, -inf
    %1123 = vmax.xlane.f32.xlu0 %v1122
    %v1124 = vpop.xlane.xlu0 %1123
    %v1125 = vsel %vm267, %v1121, -inf
    %1126 = vmax.xlane.f32.xlu0 %v1125
    %v1127 = vpop.xlane.xlu0 %1126
    %v1128 = vsub.f32 %v1120, %v1124
    %v1129 = vsub.f32 %v1121, %v1127
    %v1130 = vmul.f32 %v1128, 1.442695
    %v1131 = vpow.pop %v1130
    %v1132 = vmul.f32 %v1129, 1.442695
    %v1133 = vpow.pop %v1132
    %v1134 = vsel %vm267, %v1131, 0.0
    %1135 = vadd.xlane.f32.xlu0 %v1134
    %v1136 = vpop.xlane.xlu0 %1135
    %v1137 = vsel %vm267, %v1133, 0.0
    %1138 = vadd.xlane.f32.xlu0 %v1137
    %v1139 = vpop.xlane.xlu0 %1138
    %v1140 = vrcp.pop %v1136
    %v1141 = vrcp.pop %v1139
    %v1142 = vmul.f32 %v1131, %v1140
    %v1143 = vmul.f32 %v1133, %v1141
    %1144 = vrot.lane.b32.xlu0 %v976, 56
    %v1145 = vpop.permute.xlu0 %1144
    %1146 = vrot.lane.b32.xlu0 %v979, 56
    %v1147 = vpop.permute.xlu0 %1146
    %v1151 = vsel %vm267, %v1142, 0
    %v1154 = vsel %vm267, %v1143, 0
    %1156 = vmatpush.msra.mxu0 0.0
    %1157 = vmatpush.msra.mxu0 0.0
    %1158 = vmatpush.msra.mxu0 0.0
    %1159 = vmatpush.msra.mxu0 0.0
    %1160 = vmatpush.msra.mxu0 0.0
    %1161 = vmatpush.msra.mxu0 0.0
    %1162 = vmatpush.msra.mxu0 0.0
    %1163 = vmatpush.msra.mxu0 0.0
    %1164 = vmatpush.msra.mxu0 0.0
    %1165 = vmatpush.msra.mxu0 0.0
    %1166 = vmatpush.msra.mxu0 0.0
    %1167 = vmatpush.msra.mxu0 0.0
    %1168 = vmatpush.msra.mxu0 0.0
    %1169 = vmatpush.msra.mxu0 0.0
    %1170 = vmatpush.msra.mxu0 %v1147
    %1171 = vmatpush.msra.mxu0 %v1145
    %1172 = vmatmul.f32.gmra.mxu0 %v1151
    %v1173 = vpop.f32.mrf.mxu0
    %v1174 = vadd.f32 0.0, %v1173
    %1175 = vmatmul.f32.gmra.mxu0 %v1154
    %v1176 = vpop.f32.mrf.mxu0
    %v1177 = vadd.f32 0.0, %v1176
    %1178 = vdwg.mxu0
    %v1180 = vsel %vm231, %v1174, 0
    %v1183 = vsel %vm231, %v1177, 0
    %1185 = vmatpush.msra.mxu0 0.0
    %1186 = vmatpush.msra.mxu0 0.0
    %1187 = vmatpush.msra.mxu0 0.0
    %1188 = vmatpush.msra.mxu0 0.0
    %1189 = vmatpush.msra.mxu0 0.0
    %1190 = vmatpush.msra.mxu0 0.0
    %1191 = vmatpush.msra.mxu0 0.0
    %1192 = vmatpush.msra.mxu0 0.0
    %1193 = vmatpush.msra.mxu0 0.0
    %1194 = vmatpush.msra.mxu0 0.0
    %1195 = vmatpush.msra.mxu0 0.0
    %1196 = vmatpush.msra.mxu0 0.0
    %1197 = vmatpush.msra.mxu0 0.0
    %1198 = vmatpush.msra.mxu0 0.0
    %1199 = vmatpush.msra.mxu0 0.0
    %1200 = vmatpush.msra.mxu0 %v949
    %1201 = vmatmul.f32.gmra.mxu0 %v1180
    %v1202 = vpop.f32.mrf.mxu0
    %v1203 = vadd.f32 0.0, %v1202
    %1204 = vmatmul.f32.gmra.mxu0 %v1183
    %v1205 = vpop.f32.mrf.mxu0
    %v1206 = vadd.f32 0.0, %v1205
    %1207 = vdwg.mxu0
    %v1209 = vsel %vm231, %v1076, 0
    %v1212 = vsel %vm231, %v1079, 0
    %1214 = vmatpush.msra.mxu0 0.0
    %1215 = vmatpush.msra.mxu0 0.0
    %1216 = vmatpush.msra.mxu0 0.0
    %1217 = vmatpush.msra.mxu0 0.0
    %1218 = vmatpush.msra.mxu0 0.0
    %1219 = vmatpush.msra.mxu0 0.0
    %1220 = vmatpush.msra.mxu0 0.0
    %1221 = vmatpush.msra.mxu0 0.0
    %1222 = vmatpush.msra.mxu0 0.0
    %1223 = vmatpush.msra.mxu0 0.0
    %1224 = vmatpush.msra.mxu0 0.0
    %1225 = vmatpush.msra.mxu0 0.0
    %1226 = vmatpush.msra.mxu0 0.0
    %1227 = vmatpush.msra.mxu0 0.0
    %1228 = vmatpush.msra.mxu0 0.0
    %1229 = vmatpush.msra.mxu0 %v948
    %1230 = vmatmul.f32.gmra.mxu0 %v1209
    %v1231 = vpop.f32.mrf.mxu0
    %v1232 = vadd.f32 %v1203, %v1231
    %1233 = vmatmul.f32.gmra.mxu0 %v1212
    %v1234 = vpop.f32.mrf.mxu0
    %v1235 = vadd.f32 %v1206, %v1234
    %1236 = vdwg.mxu0
    %1237 = vrot.lane.b32.xlu0 %v981, 112
    %v1238 = vpop.permute.xlu0 %1237
    %1239 = vrot.lane.b32.xlu0 %v982, 112
    %v1240 = vpop.permute.xlu0 %1239
    %1241 = vrot.lane.b32.xlu0 %v976, 80
    %v1242 = vpop.permute.xlu0 %1241
    %1243 = vrot.lane.b32.xlu0 %v979, 80
    %v1244 = vpop.permute.xlu0 %1243
    %v1245 = vsel %vm231, %v1238, 0
    %v1247 = vsel %vm231, %v1240, 0
    %v1249 = vsel %vm231, %v1242, 0
    %v1251 = vsel %vm231, %v1244, 0
    %1253 = vmatpush.xpose.msra.mxu0 0.0
    %1254 = vmatpush.xpose.msra.mxu0 0.0
    %1255 = vmatpush.xpose.msra.mxu0 0.0
    %1256 = vmatpush.xpose.msra.mxu0 0.0
    %1257 = vmatpush.xpose.msra.mxu0 0.0
    %1258 = vmatpush.xpose.msra.mxu0 0.0
    %1259 = vmatpush.xpose.msra.mxu0 0.0
    %1260 = vmatpush.xpose.msra.mxu0 0.0
    %1261 = vmatpush.xpose.msra.mxu0 0.0
    %1262 = vmatpush.xpose.msra.mxu0 0.0
    %1263 = vmatpush.xpose.msra.mxu0 0.0
    %1264 = vmatpush.xpose.msra.mxu0 0.0
    %1265 = vmatpush.xpose.msra.mxu0 0.0
    %1266 = vmatpush.xpose.msra.mxu0 0.0
    %1267 = vmatpush.xpose.msra.mxu0 %v1251
    %1268 = vmatpush.xpose.msra.mxu0 %v1249
    %1269 = vmatmul.f32.gmra.mxu0 %v1245
    %v1270 = vpop.f32.mrf.mxu0
    %v1271 = vadd.f32 0.0, %v1270
    %1272 = vmatmul.f32.gmra.mxu0 %v1247
    %v1273 = vpop.f32.mrf.mxu0
    %v1274 = vadd.f32 0.0, %v1273
    %1275 = vdwg.mxu0
    %v1276 = vsel %vm184, %v1271, -1e+30
    %v1277 = vsel %vm185, %v1274, -1e+30
    %v1278 = vsel %vm267, %v1276, -inf
    %1279 = vmax.xlane.f32.xlu0 %v1278
    %v1280 = vpop.xlane.xlu0 %1279
    %v1281 = vsel %vm267, %v1277, -inf
    %1282 = vmax.xlane.f32.xlu0 %v1281
    %v1283 = vpop.xlane.xlu0 %1282
    %v1284 = vsub.f32 %v1276, %v1280
    %v1285 = vsub.f32 %v1277, %v1283
    %v1286 = vmul.f32 %v1284, 1.442695
    %v1287 = vpow.pop %v1286
    %v1288 = vmul.f32 %v1285, 1.442695
    %v1289 = vpow.pop %v1288
    %v1290 = vsel %vm267, %v1287, 0.0
    %1291 = vadd.xlane.f32.xlu0 %v1290
    %v1292 = vpop.xlane.xlu0 %1291
    %v1293 = vsel %vm267, %v1289, 0.0
    %1294 = vadd.xlane.f32.xlu0 %v1293
    %v1295 = vpop.xlane.xlu0 %1294
    %v1296 = vrcp.pop %v1292
    %v1297 = vrcp.pop %v1295
    %v1298 = vmul.f32 %v1287, %v1296
    %v1299 = vmul.f32 %v1289, %v1297
    %1300 = vrot.lane.b32.xlu0 %v976, 48
    %v1301 = vpop.permute.xlu0 %1300
    %1302 = vrot.lane.b32.xlu0 %v979, 48
    %v1303 = vpop.permute.xlu0 %1302
    %v1307 = vsel %vm267, %v1298, 0
    %v1310 = vsel %vm267, %v1299, 0
    %1312 = vmatpush.msra.mxu0 0.0
    %1313 = vmatpush.msra.mxu0 0.0
    %1314 = vmatpush.msra.mxu0 0.0
    %1315 = vmatpush.msra.mxu0 0.0
    %1316 = vmatpush.msra.mxu0 0.0
    %1317 = vmatpush.msra.mxu0 0.0
    %1318 = vmatpush.msra.mxu0 0.0
    %1319 = vmatpush.msra.mxu0 0.0
    %1320 = vmatpush.msra.mxu0 0.0
    %1321 = vmatpush.msra.mxu0 0.0
    %1322 = vmatpush.msra.mxu0 0.0
    %1323 = vmatpush.msra.mxu0 0.0
    %1324 = vmatpush.msra.mxu0 0.0
    %1325 = vmatpush.msra.mxu0 0.0
    %1326 = vmatpush.msra.mxu0 %v1303
    %1327 = vmatpush.msra.mxu0 %v1301
    %1328 = vmatmul.f32.gmra.mxu0 %v1307
    %v1329 = vpop.f32.mrf.mxu0
    %v1330 = vadd.f32 0.0, %v1329
    %1331 = vmatmul.f32.gmra.mxu0 %v1310
    %v1332 = vpop.f32.mrf.mxu0
    %v1333 = vadd.f32 0.0, %v1332
    %1334 = vdwg.mxu0
    %v1336 = vsel %vm231, %v1330, 0
    %v1339 = vsel %vm231, %v1333, 0
    %1341 = vmatpush.msra.mxu0 0.0
    %1342 = vmatpush.msra.mxu0 0.0
    %1343 = vmatpush.msra.mxu0 0.0
    %1344 = vmatpush.msra.mxu0 0.0
    %1345 = vmatpush.msra.mxu0 0.0
    %1346 = vmatpush.msra.mxu0 0.0
    %1347 = vmatpush.msra.mxu0 0.0
    %1348 = vmatpush.msra.mxu0 0.0
    %1349 = vmatpush.msra.mxu0 0.0
    %1350 = vmatpush.msra.mxu0 0.0
    %1351 = vmatpush.msra.mxu0 0.0
    %1352 = vmatpush.msra.mxu0 0.0
    %1353 = vmatpush.msra.mxu0 0.0
    %1354 = vmatpush.msra.mxu0 0.0
    %1355 = vmatpush.msra.mxu0 0.0
    %1356 = vmatpush.msra.mxu0 %v950
    %1357 = vmatmul.f32.gmra.mxu0 %v1336
    %v1358 = vpop.f32.mrf.mxu0
    %v1359 = vadd.f32 0.0, %v1358
    %1360 = vmatmul.f32.gmra.mxu0 %v1339
    %v1361 = vpop.f32.mrf.mxu0
    %v1362 = vadd.f32 0.0, %v1361
    %1363 = vdwg.mxu0
    %v1364 = vadd.f32 %v1232, %v1359
    %v1365 = vadd.f32 %v1235, %v1362
    %1366 = vrot.lane.b32.xlu0 %v981, 104
    %v1367 = vpop.permute.xlu0 %1366
    %1368 = vrot.lane.b32.xlu0 %v982, 104
    %v1369 = vpop.permute.xlu0 %1368
    %1370 = vrot.lane.b32.xlu0 %v976, 72
    %v1371 = vpop.permute.xlu0 %1370
    %1372 = vrot.lane.b32.xlu0 %v979, 72
    %v1373 = vpop.permute.xlu0 %1372
    %v1374 = vsel %vm231, %v1367, 0
    %v1376 = vsel %vm231, %v1369, 0
    %v1378 = vsel %vm231, %v1371, 0
    %v1380 = vsel %vm231, %v1373, 0
    %1382 = vmatpush.xpose.msra.mxu0 0.0
    %1383 = vmatpush.xpose.msra.mxu0 0.0
    %1384 = vmatpush.xpose.msra.mxu0 0.0
    %1385 = vmatpush.xpose.msra.mxu0 0.0
    %1386 = vmatpush.xpose.msra.mxu0 0.0
    %1387 = vmatpush.xpose.msra.mxu0 0.0
    %1388 = vmatpush.xpose.msra.mxu0 0.0
    %1389 = vmatpush.xpose.msra.mxu0 0.0
    %1390 = vmatpush.xpose.msra.mxu0 0.0
    %1391 = vmatpush.xpose.msra.mxu0 0.0
    %1392 = vmatpush.xpose.msra.mxu0 0.0
    %1393 = vmatpush.xpose.msra.mxu0 0.0
    %1394 = vmatpush.xpose.msra.mxu0 0.0
    %1395 = vmatpush.xpose.msra.mxu0 0.0
    %1396 = vmatpush.xpose.msra.mxu0 %v1380
    %1397 = vmatpush.xpose.msra.mxu0 %v1378
    %1398 = vmatmul.f32.gmra.mxu0 %v1374
    %v1399 = vpop.f32.mrf.mxu0
    %v1400 = vadd.f32 0.0, %v1399
    %1401 = vmatmul.f32.gmra.mxu0 %v1376
    %v1402 = vpop.f32.mrf.mxu0
    %v1403 = vadd.f32 0.0, %v1402
    %1404 = vdwg.mxu0
    %v1405 = vsel %vm184, %v1400, -1e+30
    %v1406 = vsel %vm185, %v1403, -1e+30
    %v1407 = vsel %vm267, %v1405, -inf
    %1408 = vmax.xlane.f32.xlu0 %v1407
    %v1409 = vpop.xlane.xlu0 %1408
    %v1410 = vsel %vm267, %v1406, -inf
    %1411 = vmax.xlane.f32.xlu0 %v1410
    %v1412 = vpop.xlane.xlu0 %1411
    %v1413 = vsub.f32 %v1405, %v1409
    %v1414 = vsub.f32 %v1406, %v1412
    %v1415 = vmul.f32 %v1413, 1.442695
    %v1416 = vpow.pop %v1415
    %v1417 = vmul.f32 %v1414, 1.442695
    %v1418 = vpow.pop %v1417
    %v1419 = vsel %vm267, %v1416, 0.0
    %1420 = vadd.xlane.f32.xlu0 %v1419
    %v1421 = vpop.xlane.xlu0 %1420
    %v1422 = vsel %vm267, %v1418, 0.0
    %1423 = vadd.xlane.f32.xlu0 %v1422
    %v1424 = vpop.xlane.xlu0 %1423
    %v1425 = vrcp.pop %v1421
    %v1426 = vrcp.pop %v1424
    %v1427 = vmul.f32 %v1416, %v1425
    %v1428 = vmul.f32 %v1418, %v1426
    %1429 = vrot.lane.b32.xlu0 %v976, 40
    %v1430 = vpop.permute.xlu0 %1429
    %1431 = vrot.lane.b32.xlu0 %v979, 40
    %v1432 = vpop.permute.xlu0 %1431
    %v1436 = vsel %vm267, %v1427, 0
    %v1439 = vsel %vm267, %v1428, 0
    %1441 = vmatpush.msra.mxu0 0.0
    %1442 = vmatpush.msra.mxu0 0.0
    %1443 = vmatpush.msra.mxu0 0.0
    %1444 = vmatpush.msra.mxu0 0.0
    %1445 = vmatpush.msra.mxu0 0.0
    %1446 = vmatpush.msra.mxu0 0.0
    %1447 = vmatpush.msra.mxu0 0.0
    %1448 = vmatpush.msra.mxu0 0.0
    %1449 = vmatpush.msra.mxu0 0.0
    %1450 = vmatpush.msra.mxu0 0.0
    %1451 = vmatpush.msra.mxu0 0.0
    %1452 = vmatpush.msra.mxu0 0.0
    %1453 = vmatpush.msra.mxu0 0.0
    %1454 = vmatpush.msra.mxu0 0.0
    %1455 = vmatpush.msra.mxu0 %v1432
    %1456 = vmatpush.msra.mxu0 %v1430
    %1457 = vmatmul.f32.gmra.mxu0 %v1436
    %v1458 = vpop.f32.mrf.mxu0
    %v1459 = vadd.f32 0.0, %v1458
    %1460 = vmatmul.f32.gmra.mxu0 %v1439
    %v1461 = vpop.f32.mrf.mxu0
    %v1462 = vadd.f32 0.0, %v1461
    %1463 = vdwg.mxu0
    %v1465 = vsel %vm231, %v1459, 0
    %v1468 = vsel %vm231, %v1462, 0
    %1470 = vmatpush.msra.mxu0 0.0
    %1471 = vmatpush.msra.mxu0 0.0
    %1472 = vmatpush.msra.mxu0 0.0
    %1473 = vmatpush.msra.mxu0 0.0
    %1474 = vmatpush.msra.mxu0 0.0
    %1475 = vmatpush.msra.mxu0 0.0
    %1476 = vmatpush.msra.mxu0 0.0
    %1477 = vmatpush.msra.mxu0 0.0
    %1478 = vmatpush.msra.mxu0 0.0
    %1479 = vmatpush.msra.mxu0 0.0
    %1480 = vmatpush.msra.mxu0 0.0
    %1481 = vmatpush.msra.mxu0 0.0
    %1482 = vmatpush.msra.mxu0 0.0
    %1483 = vmatpush.msra.mxu0 0.0
    %1484 = vmatpush.msra.mxu0 0.0
    %1485 = vmatpush.msra.mxu0 %v951
    %1486 = vmatmul.f32.gmra.mxu0 %v1465
    %v1487 = vpop.f32.mrf.mxu0
    %v1488 = vadd.f32 0.0, %v1487
    %1489 = vmatmul.f32.gmra.mxu0 %v1468
    %v1490 = vpop.f32.mrf.mxu0
    %v1491 = vadd.f32 0.0, %v1490
    %1492 = vdwg.mxu0
    %v1493 = vadd.f32 %v1364, %v1488
    %v1494 = vadd.f32 %v1365, %v1491
    %s1495 = scalar_lea.vmem %s6, 1
    %v1496 = vld [vmem:[%s1495] sm:$0x1]
    %v1498 = vperm.slane %v1496, 0
    %v1500 = vadd.f32 %v1493, %v1498
    %v1501 = vadd.f32 %v1494, %v1498
    %v1502 = vadd.f32 %v940, %v1500
    %v1503 = vadd.f32 %v941, %v1501
    %s1504 = scalar_lea.vmem %s7, 1
    %v1505 = vld [vmem:[%s1504] sm:$0x1]
    %s1506 = scalar_lea.vmem %s8, 1
    %v1507 = vld [vmem:[%s1506] sm:$0x1]
    %v1508 = vsel %vm116, %v1502, 0.0
    %1509 = vadd.xlane.f32.xlu0 %v1508
    %v1510 = vpop.xlane.xlu0 %1509
    %v1511 = vsel %vm116, %v1503, 0.0
    %1512 = vadd.xlane.f32.xlu0 %v1511
    %v1513 = vpop.xlane.xlu0 %1512
    %v1514 = vmul.f32 %v1510, %v129
    %v1515 = vmul.f32 %v1513, %v129
    %v1516 = vsub.f32 %v1502, %v1514
    %v1517 = vsub.f32 %v1503, %v1515
    %v1518 = vmul.f32 %v1516, %v1516
    %v1519 = vmul.f32 %v1517, %v1517
    %v1520 = vsel %vm116, %v1518, 0.0
    %1521 = vadd.xlane.f32.xlu0 %v1520
    %v1522 = vpop.xlane.xlu0 %1521
    %v1523 = vsel %vm116, %v1519, 0.0
    %1524 = vadd.xlane.f32.xlu0 %v1523
    %v1525 = vpop.xlane.xlu0 %1524
    %v1526 = vmul.f32 %v1522, %v129
    %v1527 = vmul.f32 %v1525, %v129
    %v1528 = vadd.f32 %v1526, 1e-06
    %v1529 = vadd.f32 %v1527, 1e-06
    %v1530 = vrsqrt.pop %v1528
    %v1531 = vmul.f32 %v1530, %v1528
    %v1532 = vmul.f32 %v1531, %v1530
    %v1533 = vmul.f32 0.5, %v1532
    %v1534 = vsub.f32 1.5, %v1533
    %v1535 = vmul.f32 %v1530, %v1534
    %vm1536 = vweird.f32 %v1528
    %vm1537 = vweird.f32 %v1530
    %vm1538 = vmor %vm1536, %vm1537
    %v1539 = vsel %vm1538, %v1530, %v1535
    %v1540 = vrsqrt.pop %v1529
    %v1541 = vmul.f32 %v1540, %v1529
    %v1542 = vmul.f32 %v1541, %v1540
    %v1543 = vmul.f32 0.5, %v1542
    %v1544 = vsub.f32 1.5, %v1543
    %v1545 = vmul.f32 %v1540, %v1544
    %vm1546 = vweird.f32 %v1529
    %vm1547 = vweird.f32 %v1540
    %vm1548 = vmor %vm1546, %vm1547
    %v1549 = vsel %vm1548, %v1540, %v1545
    %v1550 = vmul.f32 %v1516, %v1539
    %v1551 = vmul.f32 %v1517, %v1549
    %v1553 = vperm.slane %v1505, 0
    %v1555 = vmul.f32 %v1550, %v1553
    %v1556 = vmul.f32 %v1551, %v1553
    %v1558 = vperm.slane %v1507, 0
    %v1560 = vadd.f32 %v1555, %v1558
    %v1561 = vadd.f32 %v1556, %v1558
    %s1562 = scalar_lea.vmem %s9, 32
    %v1563 = vld [vmem:[%s1562] sm:$0xff]
    %v1564 = vld [vmem:[%s1562 + $0x8] sm:$0xff]
    %v1565 = vld [vmem:[%s1562 + $0x10] sm:$0xff]
    %v1566 = vld [vmem:[%s1562 + $0x18] sm:$0xff]
    %s1567 = scalar_lea.vmem %s10, 1
    %v1568 = vld [vmem:[%s1567] sm:$0x1]
    %v1570 = vperm.slane %v1568, 0
    %v1573 = vsel %vm116, %v1560, 0
    %v1576 = vsel %vm116, %v1561, 0
    %1578 = vmatpush.msra.mxu0 0.0
    %1579 = vmatpush.msra.mxu0 0.0
    %1580 = vmatpush.msra.mxu0 0.0
    %1581 = vmatpush.msra.mxu0 0.0
    %1582 = vmatpush.msra.mxu0 0.0
    %1583 = vmatpush.msra.mxu0 0.0
    %1584 = vmatpush.msra.mxu0 0.0
    %1585 = vmatpush.msra.mxu0 0.0
    %1586 = vmatpush.msra.mxu0 0.0
    %1587 = vmatpush.msra.mxu0 0.0
    %1588 = vmatpush.msra.mxu0 0.0
    %1589 = vmatpush.msra.mxu0 0.0
    %1590 = vmatpush.msra.mxu0 %v1566
    %1591 = vmatpush.msra.mxu0 %v1565
    %1592 = vmatpush.msra.mxu0 %v1564
    %1593 = vmatpush.msra.mxu0 %v1563
    %1594 = vmatmul.f32.gmra.mxu0 %v1573
    %v1595 = vpop.f32.mrf.mxu0
    %v1596 = vadd.f32 %v1570, %v1595
    %1597 = vmatmul.f32.gmra.mxu0 %v1576
    %v1598 = vpop.f32.mrf.mxu0
    %v1599 = vadd.f32 %v1570, %v1598
    %1600 = vdwg.mxu0
    %v1601 = vmax.f32 %v1596, 0.0
    %v1602 = vmax.f32 %v1599, 0.0
    %s1603 = scalar_lea.vmem %s11, 64
    %v1604 = vld [vmem:[%s1603] sm:$0xff]
    %v1605 = vld [vmem:[%s1603 + $0x8] sm:$0xff]
    %v1606 = vld [vmem:[%s1603 + $0x10] sm:$0xff]
    %v1607 = vld [vmem:[%s1603 + $0x18] sm:$0xff]
    %v1608 = vld [vmem:[%s1603 + $0x20] sm:$0xff]
    %v1609 = vld [vmem:[%s1603 + $0x28] sm:$0xff]
    %v1610 = vld [vmem:[%s1603 + $0x30] sm:$0xff]
    %v1611 = vld [vmem:[%s1603 + $0x38] sm:$0xff]
    %s1612 = scalar_lea.vmem %s12, 1
    %v1613 = vld [vmem:[%s1612] sm:$0x1]
    %v1615 = vperm.slane %v1613, 0
    %v1618 = vsel %vm854, %v1601, 0
    %v1621 = vsel %vm854, %v1602, 0
    %1623 = vmatpush.msra.mxu0 0.0
    %1624 = vmatpush.msra.mxu0 0.0
    %1625 = vmatpush.msra.mxu0 0.0
    %1626 = vmatpush.msra.mxu0 0.0
    %1627 = vmatpush.msra.mxu0 0.0
    %1628 = vmatpush.msra.mxu0 0.0
    %1629 = vmatpush.msra.mxu0 0.0
    %1630 = vmatpush.msra.mxu0 0.0
    %1631 = vmatpush.msra.mxu0 %v1611
    %1632 = vmatpush.msra.mxu0 %v1610
    %1633 = vmatpush.msra.mxu0 %v1609
    %1634 = vmatpush.msra.mxu0 %v1608
    %1635 = vmatpush.msra.mxu0 %v1607
    %1636 = vmatpush.msra.mxu0 %v1606
    %1637 = vmatpush.msra.mxu0 %v1605
    %1638 = vmatpush.msra.mxu0 %v1604
    %1639 = vmatmul.f32.gmra.mxu0 %v1618
    %v1640 = vpop.f32.mrf.mxu0
    %v1641 = vadd.f32 %v1615, %v1640
    %1642 = vmatmul.f32.gmra.mxu0 %v1621
    %v1643 = vpop.f32.mrf.mxu0
    %v1644 = vadd.f32 %v1615, %v1643
    %1645 = vdwg.mxu0
    %v1646 = vadd.f32 %v1560, %v1641
    %v1647 = vadd.f32 %v1561, %v1644
    %s1648 = scalar_lea.vmem %s13, 1
    %v1649 = vld [vmem:[%s1648] sm:$0x1]
    %s1650 = scalar_lea.vmem %s14, 1
    %v1651 = vld [vmem:[%s1650] sm:$0x1]
    %v1652 = vsel %vm116, %v1646, 0.0
    %1653 = vadd.xlane.f32.xlu0 %v1652
    %v1654 = vpop.xlane.xlu0 %1653
    %v1655 = vsel %vm116, %v1647, 0.0
    %1656 = vadd.xlane.f32.xlu0 %v1655
    %v1657 = vpop.xlane.xlu0 %1656
    %v1658 = vmul.f32 %v1654, %v129
    %v1659 = vmul.f32 %v1657, %v129
    %v1660 = vsub.f32 %v1646, %v1658
    %v1661 = vsub.f32 %v1647, %v1659
    %v1662 = vmul.f32 %v1660, %v1660
    %v1663 = vmul.f32 %v1661, %v1661
    %v1664 = vsel %vm116, %v1662, 0.0
    %1665 = vadd.xlane.f32.xlu0 %v1664
    %v1666 = vpop.xlane.xlu0 %1665
    %v1667 = vsel %vm116, %v1663, 0.0
    %1668 = vadd.xlane.f32.xlu0 %v1667
    %v1669 = vpop.xlane.xlu0 %1668
    %v1670 = vmul.f32 %v1666, %v129
    %v1671 = vmul.f32 %v1669, %v129
    %v1672 = vadd.f32 %v1670, 1e-06
    %v1673 = vadd.f32 %v1671, 1e-06
    %v1674 = vrsqrt.pop %v1672
    %v1675 = vmul.f32 %v1674, %v1672
    %v1676 = vmul.f32 %v1675, %v1674
    %v1677 = vmul.f32 0.5, %v1676
    %v1678 = vsub.f32 1.5, %v1677
    %v1679 = vmul.f32 %v1674, %v1678
    %vm1680 = vweird.f32 %v1672
    %vm1681 = vweird.f32 %v1674
    %vm1682 = vmor %vm1680, %vm1681
    %v1683 = vsel %vm1682, %v1674, %v1679
    %v1684 = vrsqrt.pop %v1673
    %v1685 = vmul.f32 %v1684, %v1673
    %v1686 = vmul.f32 %v1685, %v1684
    %v1687 = vmul.f32 0.5, %v1686
    %v1688 = vsub.f32 1.5, %v1687
    %v1689 = vmul.f32 %v1684, %v1688
    %vm1690 = vweird.f32 %v1673
    %vm1691 = vweird.f32 %v1684
    %vm1692 = vmor %vm1690, %vm1691
    %v1693 = vsel %vm1692, %v1684, %v1689
    %v1694 = vmul.f32 %v1660, %v1683
    %v1695 = vmul.f32 %v1661, %v1693
    %v1697 = vperm.slane %v1649, 0
    %v1699 = vmul.f32 %v1694, %v1697
    %v1700 = vmul.f32 %v1695, %v1697
    %v1702 = vperm.slane %v1651, 0
    %v1704 = vadd.f32 %v1699, %v1702
    %v1705 = vadd.f32 %v1700, %v1702
    %v1706 = vsel %vm116, %v1704, 0.0
    %v1707 = vrot.slane %v1706, 4
    %v1708 = vadd.f32 %v1706, %v1707
    %v1709 = vrot.slane %v1708, 2
    %v1710 = vadd.f32 %v1708, %v1709
    %v1711 = vrot.slane %v1710, 1
    %v1712 = vadd.f32 %v1710, %v1711
    %v1713 = vsel %vm116, %v1705, 0.0
    %v1714 = vrot.slane %v1713, 4
    %v1715 = vadd.f32 %v1713, %v1714
    %v1716 = vrot.slane %v1715, 2
    %v1717 = vadd.f32 %v1715, %v1716
    %v1718 = vrot.slane %v1717, 1
    %v1719 = vadd.f32 %v1717, %v1718
    %v1720 = vmul.f32 %v1712, 0.125
    %v1721 = vmul.f32 %v1719, 0.125
    %v1722 = vld [vmem:[%s15] sm:$0xff]
    %v1723 = vld [vmem:[%s15 + $0x8] sm:$0xff]
    %v1724 = vld [vmem:[%s15 + $0x10] sm:$0xff]
    %v1725 = vld [vmem:[%s15 + $0x18] sm:$0xff]
    %v1726 = vld [vmem:[%s16] sm:$0x1]
    %v1728 = vperm.slane %v1726, 0
    %vm1732 = vcmask 1041409
    %v1733 = vsel %vm1732, %v1721, %v1720
    %v1734 = vsel %vm116, %v1733, 0
    %1736 = vmatpush.msra.mxu0 0.0
    %1737 = vmatpush.msra.mxu0 0.0
    %1738 = vmatpush.msra.mxu0 0.0
    %1739 = vmatpush.msra.mxu0 0.0
    %1740 = vmatpush.msra.mxu0 0.0
    %1741 = vmatpush.msra.mxu0 0.0
    %1742 = vmatpush.msra.mxu0 0.0
    %1743 = vmatpush.msra.mxu0 0.0
    %1744 = vmatpush.msra.mxu0 0.0
    %1745 = vmatpush.msra.mxu0 0.0
    %1746 = vmatpush.msra.mxu0 0.0
    %1747 = vmatpush.msra.mxu0 0.0
    %1748 = vmatpush.msra.mxu0 %v1725
    %1749 = vmatpush.msra.mxu0 %v1724
    %1750 = vmatpush.msra.mxu0 %v1723
    %1751 = vmatpush.msra.mxu0 %v1722
    %1752 = vmatmul.f32.gmra.mxu0 %v1734
    %v1753 = vpop.f32.mrf.mxu0
    %v1754 = vadd.f32 %v1728, %v1753
    %1755 = vdwg.mxu0
    %vm1756 = vcmask 123904
    %1757 = vst.msk [vmem:[#allocation2] sm:$0x3] %vm1756, %v1754
    // Predicated region
    $region70: #{tpu_custom_call.1} parent=1 // pred_check
      _
    $region71: #{tpu_custom_call.1} parent=1 // pred_check_branch
      %1759 = sbr.rel (0) target = $region73
    $region72: #{tpu_custom_call.1} parent=1 // pred_region
      %1761 = vsyncadd [#allocation3], 0
      %s1763 = sshll.u32 [#allocation2], 4
      %s1764 = int_to_ptr.vmem [resolvable:$true] %s1763
      %s1765 = sshll.u32 %s17, 4
      %s1766 = int_to_ptr.hbm [resolvable:$true] %s1765
      %1768 = dma.vmem_to_hbm [thread:$0]  %s1764, 32, %s1766, [#allocation3]
    $region73: #{tpu_custom_call.1} parent=1 // pred_fallthru
      _
    // Predicated region
    $region74: #{tpu_custom_call.1} parent=1 // pred_check
      _
    $region75: #{tpu_custom_call.1} parent=1 // pred_check_branch
      %1770 = sbr.rel (0) target = $region77
    $region76: #{tpu_custom_call.1} parent=1 // pred_region
      %1772 = dma.done [#allocation3], 32
    $region77: #{tpu_custom_call.1} parent=1 // pred_fallthru
      _
    %1773 = vsyncpa [#allocation3], 1

</llo_original>
